<compile_context>
chip_gen: v7x
topology: tpu7x:2x2x1
jax: 0.10.0
libtpu: 0.0.40
codegen_flags: <defaults>
</compile_context>

<pallas_src>
import functools

import jax
import jax.numpy as jnp
from jax import lax
from jax.experimental import pallas as pl
from jax.experimental.pallas import tpu as pltpu

IN_F = 28 * 28   # 784
H1 = 512
H2 = 256
OUT_F = 10
OUT_PAD = 128    # lane-dense output width (sliced back to 10 in the wrapper)


def _round_up(x, m):
    return (x + m - 1) // m * m


def _cdiv(a, b):
    return (a + b - 1) // b


def mlp_kernel(x_ref, w1_ref, b1_ref, w2_ref, b2_ref, w3_ref, b3_ref, o_ref,
               *, apply_sigmoid=False):
    cdt = w1_ref.dtype                       # MXU operand dtype (bf16 default, f32 optional)
    x = x_ref[...].astype(jnp.float32)
    if apply_sigmoid:                        # forward_sigmoidpreprocess variant (EUP)
        x = jax.nn.sigmoid(x)
    # fc1 + relu (MXU operands in cdt, accumulation / bias / ReLU in f32)
    h1 = jnp.dot(x.astype(cdt), w1_ref[...], preferred_element_type=jnp.float32)
    h1 = jnp.maximum(h1 + b1_ref[...], 0.0)
    # fc2 + relu
    h2 = jnp.dot(h1.astype(cdt), w2_ref[...], preferred_element_type=jnp.float32)
    h2 = jnp.maximum(h2 + b2_ref[...], 0.0)
    # fc3 (no activation), lane-dense 128-wide store
    out = jnp.dot(h2.astype(cdt), w3_ref[...], preferred_element_type=jnp.float32)
    o_ref[...] = (out + b3_ref[...]).astype(o_ref.dtype)


def prepare_params(params, compute_dtype=jnp.bfloat16):
    """One-time prep: transpose PyTorch [out,in] -> [in,out], pad only the tiny last
    layer to a lane-dense 128 columns, cast weights to the MXU operand dtype.
    Biases stay f32 (added after the f32 accumulation)."""
    w1, b1, w2, b2, w3, b3 = params
    w1_t = w1.T.astype(compute_dtype)                                            # [784, 512]
    w2_t = w2.T.astype(compute_dtype)                                            # [512, 256]
    w3_t = jnp.pad(w3.T, ((0, 0), (0, OUT_PAD - OUT_F))).astype(compute_dtype)   # [256, 128]
    b1_r = b1.reshape(1, H1).astype(jnp.float32)
    b2_r = b2.reshape(1, H2).astype(jnp.float32)
    b3_r = jnp.pad(b3, (0, OUT_PAD - OUT_F)).reshape(1, OUT_PAD).astype(jnp.float32)
    return (w1_t, b1_r, w2_t, b2_r, w3_t, b3_r)


def mlp_forward(x_nchw, prepped, *, block_batch=1024, apply_sigmoid=False):
    """x_nchw: [B, 1, 28, 28] (anything x.view(-1, 784) accepts). Returns [B, 10] f32."""
    w1_t, b1_r, w2_t, b2_r, w3_t, b3_r = prepped
    compute_dtype = w1_t.dtype

    x = x_nchw.reshape(-1, IN_F)              # same semantics as x.view(-1, 784)
    B = x.shape[0]

    # Pad batch only to a sublane multiple (<= 7 extra rows), never to a full tile.
    b8 = _round_up(B, 8)
    if b8 != B:
        x = jnp.pad(x, ((0, b8 - B), (0, 0)))

    # Batch tile: multiple of 8; force >= 2 grid steps when B >= 16 so the "parallel"
    # batch axis can be sharded across v7x's two TensorCores.
    block_batch = max(8, _round_up(block_batch, 8))
    tb = min(block_batch, b8)
    if b8 >= 16:
        tb = min(tb, _round_up(_cdiv(b8, 2), 8))
    grid = (_cdiv(b8, tb),)                    # partial final block handled by Pallas

    # VMEM footprint: x/out tiles (double-buffered) + weights/biases (double-buffered,
    # constant index) + f32 h1/h2 intermediates; 1.5x headroom, clamped to [16, 48] MiB.
    w_itemsize = jnp.dtype(compute_dtype).itemsize
    footprint = (
        2 * tb * IN_F * x.dtype.itemsize                       # x tile double buffer
        + 2 * tb * OUT_PAD * 4                                 # out tile double buffer (f32)
        + 2 * ((IN_F * H1 + H1 * H2 + H2 * OUT_PAD) * w_itemsize
               + (H1 + H2 + OUT_PAD) * 4)                      # weights + biases
        + tb * (H1 + H2) * 4                                   # h1 / h2 temporaries
    )
    vmem_limit = min(48 * 1024 * 1024, max(16 * 1024 * 1024, int(1.5 * footprint)))

    weight_bytes = sum(a.size * a.dtype.itemsize for a in prepped)
    cost = pl.CostEstimate(
        flops=2 * b8 * (IN_F * H1 + H1 * H2 + H2 * OUT_PAD),
        transcendentals=(b8 * IN_F) if apply_sigmoid else 0,
        bytes_accessed=x.size * x.dtype.itemsize + weight_bytes + b8 * OUT_PAD * 4,
    )

    kernel = functools.partial(mlp_kernel, apply_sigmoid=apply_sigmoid)

    out = pl.pallas_call(
        kernel,
        out_shape=jax.ShapeDtypeStruct((b8, OUT_PAD), jnp.float32),
        grid=grid,
        in_specs=[
            pl.BlockSpec((tb, IN_F), lambda i: (i, 0)),       # x tile, pipelined over batch
            pl.BlockSpec((IN_F, H1), lambda i: (0, 0)),       # w1.T  (VMEM-resident)
            pl.BlockSpec((1, H1), lambda i: (0, 0)),          # b1
            pl.BlockSpec((H1, H2), lambda i: (0, 0)),         # w2.T
            pl.BlockSpec((1, H2), lambda i: (0, 0)),          # b2
            pl.BlockSpec((H2, OUT_PAD), lambda i: (0, 0)),    # w3.T (padded to 128 cols)
            pl.BlockSpec((1, OUT_PAD), lambda i: (0, 0)),     # b3   (padded)
        ],
        out_specs=pl.BlockSpec((tb, OUT_PAD), lambda i: (i, 0)),
        compiler_params=pltpu.CompilerParams(
            dimension_semantics=("parallel",),
            vmem_limit_bytes=vmem_limit,
        ),
        cost_estimate=cost,
    )(x, w1_t, b1_r, w2_t, b2_r, w3_t, b3_r)

    return out[:B, :OUT_F]


def init_params(key):
    """Deterministic init mimicking nn.Linear default (uniform(-1/sqrt(in), 1/sqrt(in)))."""
    def linear_init(k, out_f, in_f):
        kw, kb = jax.random.split(k)
        bound = 1.0 / jnp.sqrt(in_f)
        w = jax.random.uniform(kw, (out_f, in_f), jnp.float32, -bound, bound)
        b = jax.random.uniform(kb, (out_f,), jnp.float32, -bound, bound)
        return w, b

    k1, k2, k3 = jax.random.split(key, 3)
    w1, b1 = linear_init(k1, H1, IN_F)
    w2, b2 = linear_init(k2, H2, H1)
    w3, b3 = linear_init(k3, OUT_F, H2)
    return (w1, b1, w2, b2, w3, b3)


def mlp_reference(x_nchw, params):
    w1, b1, w2, b2, w3, b3 = params
    x = x_nchw.reshape(-1, IN_F)
    hi = lax.Precision.HIGHEST
    h1 = jax.nn.relu(jnp.dot(x, w1.T, precision=hi) + b1)
    h2 = jax.nn.relu(jnp.dot(h1, w2.T, precision=hi) + b2)
    return jnp.dot(h2, w3.T, precision=hi) + b3


if __name__ == "__main__":
    key = jax.random.PRNGKey(0)
    k_params, k_x = jax.random.split(key)
    params = init_params(k_params)

    x = jax.random.normal(k_x, (32, 1, 28, 28), jnp.float32)
    ref = mlp_reference(x, params)

    # --- default bf16 operand path (bf16-native MXU on v5e/v6e/v7x), f32 accumulation ---
    prepped_bf16 = prepare_params(params)                       # bf16 weights by default
    out_bf16 = jax.block_until_ready(mlp_forward(x, prepped_bf16))
    assert out_bf16.shape == (32, 10)
    assert bool(jnp.all(jnp.isfinite(out_bf16)))
    assert jnp.allclose(out_bf16, ref, atol=2e-1, rtol=2e-1)    # loose: bf16 operands

    # --- f32 operand path, multi-step batch grid (B=32 -> tb=16 -> grid=(2,)) ---
    prepped_f32 = prepare_params(params, jnp.float32)
    out_f32 = jax.block_until_ready(mlp_forward(x, prepped_f32))
    assert out_f32.shape == (32, 10)
    assert jnp.allclose(out_f32, ref, atol=1e-3, rtol=1e-3)

    # --- ragged batch (B=5 -> padded only to one 8-row sublane tile) ---
    x5 = jax.random.normal(jax.random.PRNGKey(1), (5, 1, 28, 28), jnp.float32)
    out5 = jax.block_until_ready(mlp_forward(x5, prepped_f32))
    assert out5.shape == (5, 10)
    assert jnp.allclose(out5, mlp_reference(x5, params), atol=1e-3, rtol=1e-3)

    print("KERNEL_OK")
</pallas_src>

<mosaic_0001>
module attributes {stable_mosaic.version = 11 : i64} {
  func.func @mlp_kernel(%arg0: i32, %arg1: memref<16x784xf32, #tpu.memory_space<vmem>>, %arg2: memref<784x512xbf16, #tpu.memory_space<vmem>>, %arg3: memref<1x512xf32, #tpu.memory_space<vmem>>, %arg4: memref<512x256xbf16, #tpu.memory_space<vmem>>, %arg5: memref<1x256xf32, #tpu.memory_space<vmem>>, %arg6: memref<256x128xbf16, #tpu.memory_space<vmem>>, %arg7: memref<1x128xf32, #tpu.memory_space<vmem>>, %arg8: memref<16x128xf32, #tpu.memory_space<vmem>>) attributes {dimension_semantics = [#tpu.dimension_semantics<parallel>], iteration_bounds = array<i64: 2>, scalar_prefetch = 0 : i64, scratch_operands = 0 : i64, tpu.core_type = #tpu.core_type<tc>, window_params = [{transform_indices = @transform_0, window_bounds = array<i64: 16, 784>}, {pipeline_mode = #tpu.pipeline_mode<synchronous>, transform_indices = @transform_1, window_bounds = array<i64: 784, 512>}, {pipeline_mode = #tpu.pipeline_mode<synchronous>, transform_indices = @transform_2, window_bounds = array<i64: 1, 512>}, {pipeline_mode = #tpu.pipeline_mode<synchronous>, transform_indices = @transform_3, window_bounds = array<i64: 512, 256>}, {pipeline_mode = #tpu.pipeline_mode<synchronous>, transform_indices = @transform_4, window_bounds = array<i64: 1, 256>}, {pipeline_mode = #tpu.pipeline_mode<synchronous>, transform_indices = @transform_5, window_bounds = array<i64: 256, 128>}, {pipeline_mode = #tpu.pipeline_mode<synchronous>, transform_indices = @transform_6, window_bounds = array<i64: 1, 128>}, {transform_indices = @transform_7, window_bounds = array<i64: 16, 128>}]} {
    %c0 = arith.constant 0 : index
    %c0_0 = arith.constant 0 : index
    %0 = vector.load %arg1[%c0, %c0_0] : memref<16x784xf32, #tpu.memory_space<vmem>>, vector<16x784xf32>
    %1 = arith.truncf %0 : vector<16x784xf32> to vector<16x784xbf16>
    %c0_1 = arith.constant 0 : index
    %c0_2 = arith.constant 0 : index
    %2 = vector.load %arg2[%c0_1, %c0_2] : memref<784x512xbf16, #tpu.memory_space<vmem>>, vector<784x512xbf16>
    %cst = arith.constant dense<0.000000e+00> : vector<16x512xf32>
    %3 = tpu.matmul %1, %2, %cst {dimension_numbers = #tpu.dot_dimension_numbers<[1], [0], [0], [1], [0, 0, 1, 1], [], []>} : vector<16x784xbf16>, vector<784x512xbf16>, vector<16x512xf32> -> vector<16x512xf32>
    %c0_3 = arith.constant 0 : index
    %c0_4 = arith.constant 0 : index
    %4 = vector.load %arg3[%c0_3, %c0_4] : memref<1x512xf32, #tpu.memory_space<vmem>>, vector<1x512xf32>
    %5 = vector.broadcast %4 : vector<1x512xf32> to vector<16x512xf32>
    %6 = arith.addf %3, %5 : vector<16x512xf32>
    %cst_5 = arith.constant 0.000000e+00 : f32
    %7 = vector.broadcast %cst_5 : f32 to vector<16x512xf32>
    %8 = arith.maximumf %6, %7 : vector<16x512xf32>
    %9 = arith.truncf %8 : vector<16x512xf32> to vector<16x512xbf16>
    %c0_6 = arith.constant 0 : index
    %c0_7 = arith.constant 0 : index
    %10 = vector.load %arg4[%c0_6, %c0_7] : memref<512x256xbf16, #tpu.memory_space<vmem>>, vector<512x256xbf16>
    %cst_8 = arith.constant dense<0.000000e+00> : vector<16x256xf32>
    %11 = tpu.matmul %9, %10, %cst_8 {dimension_numbers = #tpu.dot_dimension_numbers<[1], [0], [0], [1], [0, 0, 1, 1], [], []>} : vector<16x512xbf16>, vector<512x256xbf16>, vector<16x256xf32> -> vector<16x256xf32>
    %c0_9 = arith.constant 0 : index
    %c0_10 = arith.constant 0 : index
    %12 = vector.load %arg5[%c0_9, %c0_10] : memref<1x256xf32, #tpu.memory_space<vmem>>, vector<1x256xf32>
    %13 = vector.broadcast %12 : vector<1x256xf32> to vector<16x256xf32>
    %14 = arith.addf %11, %13 : vector<16x256xf32>
    %cst_11 = arith.constant 0.000000e+00 : f32
    %15 = vector.broadcast %cst_11 : f32 to vector<16x256xf32>
    %16 = arith.maximumf %14, %15 : vector<16x256xf32>
    %17 = arith.truncf %16 : vector<16x256xf32> to vector<16x256xbf16>
    %c0_12 = arith.constant 0 : index
    %c0_13 = arith.constant 0 : index
    %18 = vector.load %arg6[%c0_12, %c0_13] : memref<256x128xbf16, #tpu.memory_space<vmem>>, vector<256x128xbf16>
    %cst_14 = arith.constant dense<0.000000e+00> : vector<16x128xf32>
    %19 = tpu.matmul %17, %18, %cst_14 {dimension_numbers = #tpu.dot_dimension_numbers<[1], [0], [0], [1], [0, 0, 1, 1], [], []>} : vector<16x256xbf16>, vector<256x128xbf16>, vector<16x128xf32> -> vector<16x128xf32>
    %c0_15 = arith.constant 0 : index
    %c0_16 = arith.constant 0 : index
    %20 = vector.load %arg7[%c0_15, %c0_16] : memref<1x128xf32, #tpu.memory_space<vmem>>, vector<1x128xf32>
    %21 = vector.broadcast %20 : vector<1x128xf32> to vector<16x128xf32>
    %22 = arith.addf %19, %21 : vector<16x128xf32>
    %c0_17 = arith.constant 0 : index
    %c0_18 = arith.constant 0 : index
    %23 = vector.load %arg8[%c0_17, %c0_18] : memref<16x128xf32, #tpu.memory_space<vmem>>, vector<16x128xf32>
    tpu.vector_store %arg8[%c0_17, %c0_18], %22 {strides = array<i32>} : memref<16x128xf32, #tpu.memory_space<vmem>>, vector<16x128xf32>,
    return
  }
  func.func @transform_0(%arg0: i32) -> (i32, i32) {
    %c0_i32 = arith.constant 0 : i32
    %c0_i32_0 = arith.constant 0 : i32
    return %arg0, %c0_i32 : i32, i32
  }
  func.func @transform_1(%arg0: i32) -> (i32, i32) {
    %c0_i32 = arith.constant 0 : i32
    %c0_i32_0 = arith.constant 0 : i32
    %c0_i32_1 = arith.constant 0 : i32
    return %c0_i32, %c0_i32_0 : i32, i32
  }
  func.func @transform_2(%arg0: i32) -> (i32, i32) {
    %c0_i32 = arith.constant 0 : i32
    %c0_i32_0 = arith.constant 0 : i32
    %c0_i32_1 = arith.constant 0 : i32
    return %c0_i32, %c0_i32_0 : i32, i32
  }
  func.func @transform_3(%arg0: i32) -> (i32, i32) {
    %c0_i32 = arith.constant 0 : i32
    %c0_i32_0 = arith.constant 0 : i32
    %c0_i32_1 = arith.constant 0 : i32
    return %c0_i32, %c0_i32_0 : i32, i32
  }
  func.func @transform_4(%arg0: i32) -> (i32, i32) {
    %c0_i32 = arith.constant 0 : i32
    %c0_i32_0 = arith.constant 0 : i32
    %c0_i32_1 = arith.constant 0 : i32
    return %c0_i32, %c0_i32_0 : i32, i32
  }
  func.func @transform_5(%arg0: i32) -> (i32, i32) {
    %c0_i32 = arith.constant 0 : i32
    %c0_i32_0 = arith.constant 0 : i32
    %c0_i32_1 = arith.constant 0 : i32
    return %c0_i32, %c0_i32_0 : i32, i32
  }
  func.func @transform_6(%arg0: i32) -> (i32, i32) {
    %c0_i32 = arith.constant 0 : i32
    %c0_i32_0 = arith.constant 0 : i32
    %c0_i32_1 = arith.constant 0 : i32
    return %c0_i32, %c0_i32_0 : i32, i32
  }
  func.func @transform_7(%arg0: i32) -> (i32, i32) {
    %c0_i32 = arith.constant 0 : i32
    %c0_i32_0 = arith.constant 0 : i32
    return %arg0, %c0_i32 : i32, i32
  }
}

</mosaic_0001>

<llo_original>
// kernel: tpu_custom_call.1
$region0: #{tpu_custom_call.1}
  #allocation0 [shape = 'u32[]', space=smem, size = 0x4, offset = 0x4, fixed_abs, tag = 'smem constant byte address 0x4 - core index']
  #allocation1 [shape = 'u32[144,128]{1,0:T(1,128)}', space=vmem, size = 0x12000, scoped, tag = 'internal scratch']
  %s0 = inlined_call_operand.hbm [shape: f32[32,784], index: 0, kind: input, shape index: {}]
  %s1 = inlined_call_operand.hbm [shape: bf16[784,512], index: 1, kind: input, shape index: {}]
  %s2 = inlined_call_operand.vmem [shape: f32[1,512], index: 2, kind: input, shape index: {}]
  %s3 = inlined_call_operand.hbm [shape: bf16[512,256], index: 3, kind: input, shape index: {}]
  %s4 = inlined_call_operand.vmem [shape: f32[1,256], index: 4, kind: input, shape index: {}]
  %s5 = inlined_call_operand.hbm [shape: bf16[256,128], index: 5, kind: input, shape index: {}]
  %s6 = inlined_call_operand.vmem [shape: f32[1,128], index: 6, kind: input, shape index: {}]
  %s7 = inlined_call_operand.hbm [shape: f32[32,128], index: 7, kind: output, shape index: {}]
  %s8 = sld [smem:[#allocation0]]
  $region77: #{tpu_custom_call.1} parent=0
    _
  %s10 = ssub.s32 1, %s8
  %s11 = scalar_select 0, %s10, %s8
  $region1: #{tpu_custom_call.1} parent=0
    #allocation2 [shape = 'u8[114688]{0}', space=vmem, size = 0x1c000, scoped, tag = 'input window, operand 0']
    #allocation3 [shape = 's32[2]{0}', space=sflag, size = 0x8, scoped, tag = 'scoped memory for tpu_custom_call.1']
    #allocation4 [shape = 's32[2]{0}', space=sflag, size = 0x8, scoped, tag = 'scoped memory for tpu_custom_call.1']
    #allocation5 [shape = 'u8[802816]{0}', space=vmem, size = 0xc4000, scoped, tag = 'input window, operand 1, single buffered']
    #allocation6 [shape = 's32[1]{0}', space=sflag, size = 0x4, scoped, tag = 'scoped memory for tpu_custom_call.1']
    #allocation7 [shape = 'u8[262144]{0}', space=vmem, size = 0x40000, scoped, tag = 'input window, operand 3, single buffered']
    #allocation8 [shape = 'u8[65536]{0}', space=vmem, size = 0x10000, scoped, tag = 'input window, operand 5, single buffered']
    #allocation9 [shape = 's32[1]{0}', space=sflag, size = 0x4, scoped, tag = 'scoped memory for tpu_custom_call.1']
    #allocation10 [shape = 'u8[16384]{0}', space=vmem, size = 0x4000, scoped, tag = 'output window, operand 0']
    %12 = vsyncpa [#allocation3], 0
    %s13 = scalar_lea.sflag [#allocation3], 1
    %14 = vsyncpa %s13, 0
    %15 = vsyncpa [#allocation6], 0
    %16 = vsyncpa [#allocation9], 0
    %17 = vsyncpa [#allocation4], 0
    %s18 = scalar_lea.sflag [#allocation4], 1
    %19 = vsyncpa %s18, 0
    loop: start=0, step=1, limit=4
    $region2: #{tpu_custom_call.1} parent=1 // loop_pre_header
      _
    $region3: #{tpu_custom_call.1} parent=1 // loop_header
      %s21 = sphi 0, %s25
      %p22 = scmp.ge.s32.totalorder %s21, 4
      %s31 = sphi 0, %s33
      %s34 = sphi 0, %s31
      %s35 = sphi 0, %s34
      %s51 = sphi 0, %s35
      %s55 = sphi 0, %s55
      %s57 = sphi 0, %s55
      %s58 = sphi 0, %s57
      %s72 = sphi 0, %s58
      %s76 = sphi 0, %s76
      %s78 = sphi 0, %s76
      %s79 = sphi 0, %s78
      %s93 = sphi 0, %s79
      %s97 = sphi 0, %s97
      %s99 = sphi 0, %s97
      %s100 = sphi 0, %s99
      %s114 = sphi 0, %s100
      %s118 = sphi 0, %s118
      %s120 = sphi 0, %s118
      %s121 = sphi 0, %s120
      %s135 = sphi 0, %s121
      %s139 = sphi 0, %s139
      %s141 = sphi 0, %s139
      %s142 = sphi 0, %s141
      %s156 = sphi 0, %s142
      %s160 = sphi 0, %s160
      %s162 = sphi 0, %s160
      %s163 = sphi 0, %s162
      %s177 = sphi 0, %s163
      %s183 = sphi 0, %s185
      %s186 = sphi 0, %s183
      %s187 = sphi 0, %s186
      %s203 = sphi 0, %s187
    $region4: #{tpu_custom_call.1} parent=1 // loop_header_branch
      %24 = sbr.rel (%p22) target = $region8
    $region5: #{tpu_custom_call.1} parent=1 // loop_body
      %s26 = ssub.s32 %s21, 1
      %s27 = ssub.s32 %s21, 2
      %s28 = sadd.s32 %s21, 1
      %s29 = ssub.s32 %s21, %s28
      %p30 = scmp.eq.s32.totalorder %s29, 0
      %s32 = sadd.s32 %s31, 1
      %s33 = scalar_select %p30, %s31, %s32
      %p36 = pneg %p30
      %p37 = scmp.eq.s32.totalorder %s21, 1
      %p38 = por %p36, %p37
      %p39 = scmp.ne.s32.totalorder %s31, %s34
      %p40 = scmp.eq.s32.totalorder %s21, 0
      %p41 = por %p39, %p40
      %p42 = scmp.ne.s32.totalorder %s31, %s34
      %p43 = scmp.eq.s32.totalorder %s26, 1
      %p44 = por %p42, %p43
      %p45 = scmp.ne.s32.totalorder %s34, %s35
      %p46 = scmp.eq.s32.totalorder %s26, 0
      %p47 = por %p45, %p46
      %p48 = scmp.ne.s32.totalorder %s34, %s35
      %p49 = scmp.eq.s32.totalorder %s27, 1
      %p50 = por %p48, %p49
      %p52 = scmp.ne.s32.totalorder %s35, %s51
      %p53 = scmp.eq.s32.totalorder %s27, 0
      %p54 = por %p52, %p53
      %s56 = sadd.s32 %s55, 1
      %p59 = scmp.eq.s32.totalorder %s21, 1
      %p60 = scmp.ne.s32.totalorder %s55, %s57
      %p61 = scmp.eq.s32.totalorder %s21, 0
      %p62 = por %p60, %p61
      %p63 = scmp.ne.s32.totalorder %s55, %s57
      %p64 = scmp.eq.s32.totalorder %s26, 1
      %p65 = por %p63, %p64
      %p66 = scmp.ne.s32.totalorder %s57, %s58
      %p67 = scmp.eq.s32.totalorder %s26, 0
      %p68 = por %p66, %p67
      %p69 = scmp.ne.s32.totalorder %s57, %s58
      %p70 = scmp.eq.s32.totalorder %s27, 1
      %p71 = por %p69, %p70
      %p73 = scmp.ne.s32.totalorder %s58, %s72
      %p74 = scmp.eq.s32.totalorder %s27, 0
      %p75 = por %p73, %p74
      %s77 = sadd.s32 %s76, 1
      %p80 = scmp.eq.s32.totalorder %s21, 1
      %p81 = scmp.ne.s32.totalorder %s76, %s78
      %p82 = scmp.eq.s32.totalorder %s21, 0
      %p83 = por %p81, %p82
      %p84 = scmp.ne.s32.totalorder %s76, %s78
      %p85 = scmp.eq.s32.totalorder %s26, 1
      %p86 = por %p84, %p85
      %p87 = scmp.ne.s32.totalorder %s78, %s79
      %p88 = scmp.eq.s32.totalorder %s26, 0
      %p89 = por %p87, %p88
      %p90 = scmp.ne.s32.totalorder %s78, %s79
      %p91 = scmp.eq.s32.totalorder %s27, 1
      %p92 = por %p90, %p91
      %p94 = scmp.ne.s32.totalorder %s79, %s93
      %p95 = scmp.eq.s32.totalorder %s27, 0
      %p96 = por %p94, %p95
      %s98 = sadd.s32 %s97, 1
      %p101 = scmp.eq.s32.totalorder %s21, 1
      %p102 = scmp.ne.s32.totalorder %s97, %s99
      %p103 = scmp.eq.s32.totalorder %s21, 0
      %p104 = por %p102, %p103
      %p105 = scmp.ne.s32.totalorder %s97, %s99
      %p106 = scmp.eq.s32.totalorder %s26, 1
      %p107 = por %p105, %p106
      %p108 = scmp.ne.s32.totalorder %s99, %s100
      %p109 = scmp.eq.s32.totalorder %s26, 0
      %p110 = por %p108, %p109
      %p111 = scmp.ne.s32.totalorder %s99, %s100
      %p112 = scmp.eq.s32.totalorder %s27, 1
      %p113 = por %p111, %p112
      %p115 = scmp.ne.s32.totalorder %s100, %s114
      %p116 = scmp.eq.s32.totalorder %s27, 0
      %p117 = por %p115, %p116
      %s119 = sadd.s32 %s118, 1
      %p122 = scmp.eq.s32.totalorder %s21, 1
      %p123 = scmp.ne.s32.totalorder %s118, %s120
      %p124 = scmp.eq.s32.totalorder %s21, 0
      %p125 = por %p123, %p124
      %p126 = scmp.ne.s32.totalorder %s118, %s120
      %p127 = scmp.eq.s32.totalorder %s26, 1
      %p128 = por %p126, %p127
      %p129 = scmp.ne.s32.totalorder %s120, %s121
      %p130 = scmp.eq.s32.totalorder %s26, 0
      %p131 = por %p129, %p130
      %p132 = scmp.ne.s32.totalorder %s120, %s121
      %p133 = scmp.eq.s32.totalorder %s27, 1
      %p134 = por %p132, %p133
      %p136 = scmp.ne.s32.totalorder %s121, %s135
      %p137 = scmp.eq.s32.totalorder %s27, 0
      %p138 = por %p136, %p137
      %s140 = sadd.s32 %s139, 1
      %p143 = scmp.eq.s32.totalorder %s21, 1
      %p144 = scmp.ne.s32.totalorder %s139, %s141
      %p145 = scmp.eq.s32.totalorder %s21, 0
      %p146 = por %p144, %p145
      %p147 = scmp.ne.s32.totalorder %s139, %s141
      %p148 = scmp.eq.s32.totalorder %s26, 1
      %p149 = por %p147, %p148
      %p150 = scmp.ne.s32.totalorder %s141, %s142
      %p151 = scmp.eq.s32.totalorder %s26, 0
      %p152 = por %p150, %p151
      %p153 = scmp.ne.s32.totalorder %s141, %s142
      %p154 = scmp.eq.s32.totalorder %s27, 1
      %p155 = por %p153, %p154
      %p157 = scmp.ne.s32.totalorder %s142, %s156
      %p158 = scmp.eq.s32.totalorder %s27, 0
      %p159 = por %p157, %p158
      %s161 = sadd.s32 %s160, 1
      %p164 = scmp.eq.s32.totalorder %s21, 1
      %p165 = scmp.ne.s32.totalorder %s160, %s162
      %p166 = scmp.eq.s32.totalorder %s21, 0
      %p167 = por %p165, %p166
      %p168 = scmp.ne.s32.totalorder %s160, %s162
      %p169 = scmp.eq.s32.totalorder %s26, 1
      %p170 = por %p168, %p169
      %p171 = scmp.ne.s32.totalorder %s162, %s163
      %p172 = scmp.eq.s32.totalorder %s26, 0
      %p173 = por %p171, %p172
      %p174 = scmp.ne.s32.totalorder %s162, %s163
      %p175 = scmp.eq.s32.totalorder %s27, 1
      %p176 = por %p174, %p175
      %p178 = scmp.ne.s32.totalorder %s163, %s177
      %p179 = scmp.eq.s32.totalorder %s27, 0
      %p180 = por %p178, %p179
      %s181 = ssub.s32 %s21, %s28
      %p182 = scmp.eq.s32.totalorder %s181, 0
      %s184 = sadd.s32 %s183, 1
      %s185 = scalar_select %p182, %s183, %s184
      %p188 = pneg %p182
      %p189 = scmp.eq.s32.totalorder %s21, 1
      %p190 = por %p188, %p189
      %p191 = scmp.ne.s32.totalorder %s183, %s186
      %p192 = scmp.eq.s32.totalorder %s21, 0
      %p193 = por %p191, %p192
      %p194 = scmp.ne.s32.totalorder %s183, %s186
      %p195 = scmp.eq.s32.totalorder %s26, 1
      %p196 = por %p194, %p195
      %p197 = scmp.ne.s32.totalorder %s186, %s187
      %p198 = scmp.eq.s32.totalorder %s26, 0
      %p199 = por %p197, %p198
      %p200 = scmp.ne.s32.totalorder %s186, %s187
      %p201 = scmp.eq.s32.totalorder %s27, 1
      %p202 = por %p200, %p201
      %p204 = scmp.ne.s32.totalorder %s187, %s203
      %p205 = scmp.eq.s32.totalorder %s27, 0
      %p206 = por %p204, %p205
      %p207 = scmp.le.s32.totalorder 1, %s21
      %p208 = scmp.lt.s32.totalorder %s21, 3
      %p209 = pnand %p207, %p208
      %p210 = pneg %p209
      // Predicated region
      $region9: #{tpu_custom_call.1} parent=5 // pred_check
        _
      $region10: #{tpu_custom_call.1} parent=5 // pred_check_branch
        %212 = sbr.rel (%p209) target = $region12
      $region11: #{tpu_custom_call.1} parent=5 // pred_region
        %s213 = ssub.s32 %s21, 1
        // Predicated region
        $region13: #{tpu_custom_call.1} parent=11 // pred_check
          %p214 = pneg %p68
        $region14: #{tpu_custom_call.1} parent=11 // pred_check_branch
          %216 = sbr.rel (%p214) target = $region16
        $region15: #{tpu_custom_call.1} parent=11 // pred_region
          %s218 = ssub.s32 25088, 25088
          %219 = vsyncadd [#allocation6], %s218
          %s220 = sshll.u32 [#allocation5], 4
          %s221 = int_to_ptr.vmem [resolvable:$true] %s220
          %226 = dma.hbm_to_vmem [thread:$0]  %s1, 25088, %s221, [#allocation6], 256, 256, 16
        $region16: #{tpu_custom_call.1} parent=11 // pred_fallthru
          _
        // Predicated region
        $region17: #{tpu_custom_call.1} parent=11 // pred_check
          %p227 = pneg %p89
        $region18: #{tpu_custom_call.1} parent=11 // pred_check_branch
          %229 = sbr.rel (%p227) target = $region20
        $region19: #{tpu_custom_call.1} parent=11 // pred_region
          _
        $region20: #{tpu_custom_call.1} parent=11 // pred_fallthru
          _
        // Predicated region
        $region21: #{tpu_custom_call.1} parent=11 // pred_check
          %p230 = pneg %p110
        $region22: #{tpu_custom_call.1} parent=11 // pred_check_branch
          %232 = sbr.rel (%p230) target = $region24
        $region23: #{tpu_custom_call.1} parent=11 // pred_region
          %s234 = ssub.s32 8192, 8192
          %235 = vsyncadd [#allocation6], %s234
          %s236 = sshll.u32 [#allocation7], 4
          %s237 = int_to_ptr.vmem [resolvable:$true] %s236
          %242 = dma.hbm_to_vmem [thread:$0]  %s3, 8192, %s237, [#allocation6], 128, 128, 8
        $region24: #{tpu_custom_call.1} parent=11 // pred_fallthru
          _
        // Predicated region
        $region25: #{tpu_custom_call.1} parent=11 // pred_check
          %p243 = pneg %p131
        $region26: #{tpu_custom_call.1} parent=11 // pred_check_branch
          %245 = sbr.rel (%p243) target = $region28
        $region27: #{tpu_custom_call.1} parent=11 // pred_region
          _
        $region28: #{tpu_custom_call.1} parent=11 // pred_fallthru
          _
        // Predicated region
        $region29: #{tpu_custom_call.1} parent=11 // pred_check
          %p246 = pneg %p152
        $region30: #{tpu_custom_call.1} parent=11 // pred_check_branch
          %248 = sbr.rel (%p246) target = $region32
        $region31: #{tpu_custom_call.1} parent=11 // pred_region
          %s250 = ssub.s32 2048, 2048
          %251 = vsyncadd [#allocation9], %s250
          %s252 = sshll.u32 [#allocation8], 4
          %s253 = int_to_ptr.vmem [resolvable:$true] %s252
          %258 = dma.hbm_to_vmem [thread:$0]  %s5, 2048, %s253, [#allocation9], 64, 64, 4
        $region32: #{tpu_custom_call.1} parent=11 // pred_fallthru
          _
        // Predicated region
        $region33: #{tpu_custom_call.1} parent=11 // pred_check
          %p259 = pneg %p173
        $region34: #{tpu_custom_call.1} parent=11 // pred_check_branch
          %261 = sbr.rel (%p259) target = $region36
        $region35: #{tpu_custom_call.1} parent=11 // pred_region
          _
        $region36: #{tpu_custom_call.1} parent=11 // pred_fallthru
          _
      $region12: #{tpu_custom_call.1} parent=5 // pred_fallthru
        _
      %p262 = scmp.lt.s32.totalorder %s21, 2
      // Predicated region
      $region37: #{tpu_custom_call.1} parent=5 // pred_check
        %p263 = pneg %p262
      $region38: #{tpu_custom_call.1} parent=5 // pred_check_branch
        %265 = sbr.rel (%p263) target = $region40
      $region39: #{tpu_custom_call.1} parent=5 // pred_region
        // Predicated region
        $region41: #{tpu_custom_call.1} parent=39 // pred_check
          %p266 = pneg %p41
        $region42: #{tpu_custom_call.1} parent=39 // pred_check_branch
          %268 = sbr.rel (%p266) target = $region44
        $region43: #{tpu_custom_call.1} parent=39 // pred_region
          %s269 = sand.u32 %s31, 1
          %s270 = scalar_lea.sflag [#allocation3], %s269
          %s271 = sand.u32 %s31, 1
          %s272 = smul.addr %s271, 112
          %s273 = scalar_lea.vmem [#allocation2], %s272
          %s274 = smul.u32 2, %s21
          %s276 = ssub.s32 1792, 1792
          %277 = vsyncadd %s270, %s276
          %s278 = smul.addr %s274, 7
          %s279 = smul.addr %s278, 128
          %s280 = scalar_lea.hbm %s0, %s279
          %s281 = sshll.u32 %s273, 4
          %s282 = int_to_ptr.vmem [resolvable:$true] %s281
          %287 = dma.hbm_to_vmem [thread:$0]  %s280, 1792, %s282, %s270, 896, 896, 56
        $region44: #{tpu_custom_call.1} parent=39 // pred_fallthru
          _
      $region40: #{tpu_custom_call.1} parent=5 // pred_fallthru
        _
      %p288 = scmp.le.s32.totalorder 1, %s21
      %p289 = scmp.lt.s32.totalorder %s21, 3
      %p290 = pnand %p288, %p289
      %p291 = pneg %p290
      // Predicated region
      $region45: #{tpu_custom_call.1} parent=5 // pred_check
        _
      $region46: #{tpu_custom_call.1} parent=5 // pred_check_branch
        %293 = sbr.rel (%p290) target = $region48
      $region47: #{tpu_custom_call.1} parent=5 // pred_region
        %s294 = ssub.s32 %s21, 1
        %s295 = sand.u32 %s34, 1
        %s296 = scalar_lea.sflag [#allocation3], %s295
        %s297 = sand.u32 %s34, 1
        %s298 = smul.addr %s297, 112
        %s299 = scalar_lea.vmem [#allocation2], %s298
        // Predicated region
        $region49: #{tpu_custom_call.1} parent=47 // pred_check
          %p300 = pneg %p47
        $region50: #{tpu_custom_call.1} parent=47 // pred_check_branch
          %302 = sbr.rel (%p300) target = $region52
        $region51: #{tpu_custom_call.1} parent=47 // pred_region
          %303 = dma.done %s296, 1792
        $region52: #{tpu_custom_call.1} parent=47 // pred_fallthru
          _
        // Predicated region
        $region53: #{tpu_custom_call.1} parent=47 // pred_check
          %p304 = pneg %p68
        $region54: #{tpu_custom_call.1} parent=47 // pred_check_branch
          %306 = sbr.rel (%p304) target = $region56
        $region55: #{tpu_custom_call.1} parent=47 // pred_region
          %307 = dma.done [#allocation6], 25088
        $region56: #{tpu_custom_call.1} parent=47 // pred_fallthru
          _
        // Predicated region
        $region57: #{tpu_custom_call.1} parent=47 // pred_check
          %p308 = pneg %p110
        $region58: #{tpu_custom_call.1} parent=47 // pred_check_branch
          %310 = sbr.rel (%p308) target = $region60
        $region59: #{tpu_custom_call.1} parent=47 // pred_region
          %311 = dma.done [#allocation6], 8192
        $region60: #{tpu_custom_call.1} parent=47 // pred_fallthru
          _
        // Predicated region
        $region61: #{tpu_custom_call.1} parent=47 // pred_check
          %p312 = pneg %p152
        $region62: #{tpu_custom_call.1} parent=47 // pred_check_branch
          %314 = sbr.rel (%p312) target = $region64
        $region63: #{tpu_custom_call.1} parent=47 // pred_region
          %315 = dma.done [#allocation9], 2048
        $region64: #{tpu_custom_call.1} parent=47 // pred_fallthru
          _
        %s316 = sand.u32 %s34, 1
        %s317 = scalar_lea.sflag [#allocation3], %s316
        %s318 = sand.u32 %s34, 1
        %s319 = smul.addr %s318, 112
        %s320 = scalar_lea.vmem [#allocation2], %s319
        %p321 = pneg %p47
        %p322 = pneg %p44
        %p323 = pneg %p68
        %p324 = pneg %p65
        %p325 = pneg %p89
        %p326 = pneg %p86
        %p327 = pneg %p110
        %p328 = pneg %p107
        %p329 = pneg %p131
        %p330 = pneg %p128
        %p331 = pneg %p152
        %p332 = pneg %p149
        %p333 = pneg %p173
        %p334 = pneg %p170
        %p335 = pneg %p199
        %p336 = pneg %p196
        %s337 = sand.u32 %s186, 1
        %s338 = scalar_lea.sflag [#allocation4], %s337
        %s339 = sand.u32 %s186, 1
        %s340 = smul.addr %s339, 16
        %s341 = scalar_lea.vmem [#allocation10], %s340
        %s342 = smul.u32 2, %s26
        %s343 = smul.u32 2, %s26
        %v345 = vld [vmem:[%s299] sm:$0xff]
        %v346 = vld [vmem:[%s299 + $0x8] sm:$0xff]
        %v347 = vld [vmem:[%s299 + $0x10] sm:$0xff]
        %v348 = vld [vmem:[%s299 + $0x18] sm:$0xff]
        %v349 = vld [vmem:[%s299 + $0x20] sm:$0xff]
        %v350 = vld [vmem:[%s299 + $0x28] sm:$0xff]
        %v351 = vld [vmem:[%s299 + $0x30] sm:$0xff]
        %v352 = vld [vmem:[%s299 + $0x38] sm:$0xff]
        %v353 = vld [vmem:[%s299 + $0x40] sm:$0xff]
        %v354 = vld [vmem:[%s299 + $0x48] sm:$0xff]
        %v355 = vld [vmem:[%s299 + $0x50] sm:$0xff]
        %v356 = vld [vmem:[%s299 + $0x58] sm:$0xff]
        %v357 = vld [vmem:[%s299 + $0x60] sm:$0xff]
        %v358 = vld [vmem:[%s299 + $0x68] sm:$0xff]
        %v359 = vpack.c.bf16 %v352, %v345
        %v360 = vpack.c.bf16 %v353, %v346
        %v361 = vpack.c.bf16 %v354, %v347
        %v362 = vpack.c.bf16 %v355, %v348
        %v363 = vpack.c.bf16 %v356, %v349
        %v364 = vpack.c.bf16 %v357, %v350
        %v365 = vpack.c.bf16 %v358, %v351
        %v366 = vld [vmem:[#allocation5] sm:$0xff]
        %v367 = vld [vmem:[#allocation5 + $0x8] sm:$0xff]
        %v368 = vld [vmem:[#allocation5 + $0x10] sm:$0xff]
        %v369 = vld [vmem:[#allocation5 + $0x18] sm:$0xff]
        %v370 = vld [vmem:[#allocation5 + $0x20] sm:$0xff]
        %v371 = vld [vmem:[#allocation5 + $0x28] sm:$0xff]
        %v372 = vld [vmem:[#allocation5 + $0x30] sm:$0xff]
        %v373 = vld [vmem:[#allocation5 + $0x38] sm:$0xff]
        %v374 = vld [vmem:[#allocation5 + $0x40] sm:$0xff]
        %v375 = vld [vmem:[#allocation5 + $0x48] sm:$0xff]
        %v376 = vld [vmem:[#allocation5 + $0x50] sm:$0xff]
        %v377 = vld [vmem:[#allocation5 + $0x58] sm:$0xff]
        %v378 = vld [vmem:[#allocation5 + $0x60] sm:$0xff]
        %v379 = vld [vmem:[#allocation5 + $0x68] sm:$0xff]
        %v380 = vld [vmem:[#allocation5 + $0x70] sm:$0xff]
        %v381 = vld [vmem:[#allocation5 + $0x78] sm:$0xff]
        %v382 = vld [vmem:[#allocation5 + $0x80] sm:$0xff]
        %v383 = vld [vmem:[#allocation5 + $0x88] sm:$0xff]
        %v384 = vld [vmem:[#allocation5 + $0x90] sm:$0xff]
        %v385 = vld [vmem:[#allocation5 + $0x98] sm:$0xff]
        %v386 = vld [vmem:[#allocation5 + $0xa0] sm:$0xff]
        %v387 = vld [vmem:[#allocation5 + $0xa8] sm:$0xff]
        %v388 = vld [vmem:[#allocation5 + $0xb0] sm:$0xff]
        %v389 = vld [vmem:[#allocation5 + $0xb8] sm:$0xff]
        %v390 = vld [vmem:[#allocation5 + $0xc0] sm:$0xff]
        %v391 = vld [vmem:[#allocation5 + $0xc8] sm:$0xff]
        %v392 = vld [vmem:[#allocation5 + $0xd0] sm:$0xff]
        %v393 = vld [vmem:[#allocation5 + $0xd8] sm:$0xff]
        %v394 = vld [vmem:[#allocation5 + $0xe0] sm:$0xff]
        %v395 = vld [vmem:[#allocation5 + $0xe8] sm:$0xff]
        %v396 = vld [vmem:[#allocation5 + $0xf0] sm:$0xff]
        %v397 = vld [vmem:[#allocation5 + $0xf8] sm:$0xff]
        %v398 = vld [vmem:[#allocation5 + $0x100] sm:$0xff]
        %v399 = vld [vmem:[#allocation5 + $0x108] sm:$0xff]
        %v400 = vld [vmem:[#allocation5 + $0x110] sm:$0xff]
        %v401 = vld [vmem:[#allocation5 + $0x118] sm:$0xff]
        %v402 = vld [vmem:[#allocation5 + $0x120] sm:$0xff]
        %v403 = vld [vmem:[#allocation5 + $0x128] sm:$0xff]
        %v404 = vld [vmem:[#allocation5 + $0x130] sm:$0xff]
        %v405 = vld [vmem:[#allocation5 + $0x138] sm:$0xff]
        %v406 = vld [vmem:[#allocation5 + $0x140] sm:$0xff]
        %v407 = vld [vmem:[#allocation5 + $0x148] sm:$0xff]
        %v408 = vld [vmem:[#allocation5 + $0x150] sm:$0xff]
        %v409 = vld [vmem:[#allocation5 + $0x158] sm:$0xff]
        %v410 = vld [vmem:[#allocation5 + $0x160] sm:$0xff]
        %v411 = vld [vmem:[#allocation5 + $0x168] sm:$0xff]
        %v412 = vld [vmem:[#allocation5 + $0x170] sm:$0xff]
        %v413 = vld [vmem:[#allocation5 + $0x178] sm:$0xff]
        %v414 = vld [vmem:[#allocation5 + $0x180] sm:$0xff]
        %v415 = vld [vmem:[#allocation5 + $0x188] sm:$0xff]
        %v416 = vld [vmem:[#allocation5 + $0x190] sm:$0xff]
        %v417 = vld [vmem:[#allocation5 + $0x198] sm:$0xff]
        %v418 = vld [vmem:[#allocation5 + $0x1a0] sm:$0xff]
        %v419 = vld [vmem:[#allocation5 + $0x1a8] sm:$0xff]
        %v420 = vld [vmem:[#allocation5 + $0x1b0] sm:$0xff]
        %v421 = vld [vmem:[#allocation5 + $0x1b8] sm:$0xff]
        %v422 = vld [vmem:[#allocation5 + $0x1c0] sm:$0xff]
        %v423 = vld [vmem:[#allocation5 + $0x1c8] sm:$0xff]
        %v424 = vld [vmem:[#allocation5 + $0x1d0] sm:$0xff]
        %v425 = vld [vmem:[#allocation5 + $0x1d8] sm:$0xff]
        %v426 = vld [vmem:[#allocation5 + $0x1e0] sm:$0xff]
        %v427 = vld [vmem:[#allocation5 + $0x1e8] sm:$0xff]
        %v428 = vld [vmem:[#allocation5 + $0x1f0] sm:$0xff]
        %v429 = vld [vmem:[#allocation5 + $0x1f8] sm:$0xff]
        %v430 = vld [vmem:[#allocation5 + $0x200] sm:$0xff]
        %v431 = vld [vmem:[#allocation5 + $0x208] sm:$0xff]
        %v432 = vld [vmem:[#allocation5 + $0x210] sm:$0xff]
        %v433 = vld [vmem:[#allocation5 + $0x218] sm:$0xff]
        %v434 = vld [vmem:[#allocation5 + $0x220] sm:$0xff]
        %v435 = vld [vmem:[#allocation5 + $0x228] sm:$0xff]
        %v436 = vld [vmem:[#allocation5 + $0x230] sm:$0xff]
        %v437 = vld [vmem:[#allocation5 + $0x238] sm:$0xff]
        %v438 = vld [vmem:[#allocation5 + $0x240] sm:$0xff]
        %v439 = vld [vmem:[#allocation5 + $0x248] sm:$0xff]
        %v440 = vld [vmem:[#allocation5 + $0x250] sm:$0xff]
        %v441 = vld [vmem:[#allocation5 + $0x258] sm:$0xff]
        %v442 = vld [vmem:[#allocation5 + $0x260] sm:$0xff]
        %v443 = vld [vmem:[#allocation5 + $0x268] sm:$0xff]
        %v444 = vld [vmem:[#allocation5 + $0x270] sm:$0xff]
        %v445 = vld [vmem:[#allocation5 + $0x278] sm:$0xff]
        %v446 = vld [vmem:[#allocation5 + $0x280] sm:$0xff]
        %v447 = vld [vmem:[#allocation5 + $0x288] sm:$0xff]
        %v448 = vld [vmem:[#allocation5 + $0x290] sm:$0xff]
        %v449 = vld [vmem:[#allocation5 + $0x298] sm:$0xff]
        %v450 = vld [vmem:[#allocation5 + $0x2a0] sm:$0xff]
        %v451 = vld [vmem:[#allocation5 + $0x2a8] sm:$0xff]
        %v452 = vld [vmem:[#allocation5 + $0x2b0] sm:$0xff]
        %v453 = vld [vmem:[#allocation5 + $0x2b8] sm:$0xff]
        %v454 = vld [vmem:[#allocation5 + $0x2c0] sm:$0xff]
        %v455 = vld [vmem:[#allocation5 + $0x2c8] sm:$0xff]
        %v456 = vld [vmem:[#allocation5 + $0x2d0] sm:$0xff]
        %v457 = vld [vmem:[#allocation5 + $0x2d8] sm:$0xff]
        %v458 = vld [vmem:[#allocation5 + $0x2e0] sm:$0xff]
        %v459 = vld [vmem:[#allocation5 + $0x2e8] sm:$0xff]
        %v460 = vld [vmem:[#allocation5 + $0x2f0] sm:$0xff]
        %v461 = vld [vmem:[#allocation5 + $0x2f8] sm:$0xff]
        %v462 = vld [vmem:[#allocation5 + $0x300] sm:$0xff]
        %v463 = vld [vmem:[#allocation5 + $0x308] sm:$0xff]
        %v464 = vld [vmem:[#allocation5 + $0x310] sm:$0xff]
        %v465 = vld [vmem:[#allocation5 + $0x318] sm:$0xff]
        %v466 = vld [vmem:[#allocation5 + $0x320] sm:$0xff]
        %v467 = vld [vmem:[#allocation5 + $0x328] sm:$0xff]
        %v468 = vld [vmem:[#allocation5 + $0x330] sm:$0xff]
        %v469 = vld [vmem:[#allocation5 + $0x338] sm:$0xff]
        %v470 = vld [vmem:[#allocation5 + $0x340] sm:$0xff]
        %v471 = vld [vmem:[#allocation5 + $0x348] sm:$0xff]
        %v472 = vld [vmem:[#allocation5 + $0x350] sm:$0xff]
        %v473 = vld [vmem:[#allocation5 + $0x358] sm:$0xff]
        %v474 = vld [vmem:[#allocation5 + $0x360] sm:$0xff]
        %v475 = vld [vmem:[#allocation5 + $0x368] sm:$0xff]
        %v476 = vld [vmem:[#allocation5 + $0x370] sm:$0xff]
        %v477 = vld [vmem:[#allocation5 + $0x378] sm:$0xff]
        %v478 = vld [vmem:[#allocation5 + $0x380] sm:$0xff]
        %v479 = vld [vmem:[#allocation5 + $0x388] sm:$0xff]
        %v480 = vld [vmem:[#allocation5 + $0x390] sm:$0xff]
        %v481 = vld [vmem:[#allocation5 + $0x398] sm:$0xff]
        %v482 = vld [vmem:[#allocation5 + $0x3a0] sm:$0xff]
        %v483 = vld [vmem:[#allocation5 + $0x3a8] sm:$0xff]
        %v484 = vld [vmem:[#allocation5 + $0x3b0] sm:$0xff]
        %v485 = vld [vmem:[#allocation5 + $0x3b8] sm:$0xff]
        %v486 = vld [vmem:[#allocation5 + $0x3c0] sm:$0xff]
        %v487 = vld [vmem:[#allocation5 + $0x3c8] sm:$0xff]
        %v488 = vld [vmem:[#allocation5 + $0x3d0] sm:$0xff]
        %v489 = vld [vmem:[#allocation5 + $0x3d8] sm:$0xff]
        %v490 = vld [vmem:[#allocation5 + $0x3e0] sm:$0xff]
        %v491 = vld [vmem:[#allocation5 + $0x3e8] sm:$0xff]
        %v492 = vld [vmem:[#allocation5 + $0x3f0] sm:$0xff]
        %v493 = vld [vmem:[#allocation5 + $0x3f8] sm:$0xff]
        %v494 = vld [vmem:[#allocation5 + $0x400] sm:$0xff]
        %v495 = vld [vmem:[#allocation5 + $0x408] sm:$0xff]
        %v496 = vld [vmem:[#allocation5 + $0x410] sm:$0xff]
        %v497 = vld [vmem:[#allocation5 + $0x418] sm:$0xff]
        %v498 = vld [vmem:[#allocation5 + $0x420] sm:$0xff]
        %v499 = vld [vmem:[#allocation5 + $0x428] sm:$0xff]
        %v500 = vld [vmem:[#allocation5 + $0x430] sm:$0xff]
        %v501 = vld [vmem:[#allocation5 + $0x438] sm:$0xff]
        %v502 = vld [vmem:[#allocation5 + $0x440] sm:$0xff]
        %v503 = vld [vmem:[#allocation5 + $0x448] sm:$0xff]
        %v504 = vld [vmem:[#allocation5 + $0x450] sm:$0xff]
        %v505 = vld [vmem:[#allocation5 + $0x458] sm:$0xff]
        %v506 = vld [vmem:[#allocation5 + $0x460] sm:$0xff]
        %v507 = vld [vmem:[#allocation5 + $0x468] sm:$0xff]
        %v508 = vld [vmem:[#allocation5 + $0x470] sm:$0xff]
        %v509 = vld [vmem:[#allocation5 + $0x478] sm:$0xff]
        %v510 = vld [vmem:[#allocation5 + $0x480] sm:$0xff]
        %v511 = vld [vmem:[#allocation5 + $0x488] sm:$0xff]
        %v512 = vld [vmem:[#allocation5 + $0x490] sm:$0xff]
        %v513 = vld [vmem:[#allocation5 + $0x498] sm:$0xff]
        %v514 = vld [vmem:[#allocation5 + $0x4a0] sm:$0xff]
        %v515 = vld [vmem:[#allocation5 + $0x4a8] sm:$0xff]
        %v516 = vld [vmem:[#allocation5 + $0x4b0] sm:$0xff]
        %v517 = vld [vmem:[#allocation5 + $0x4b8] sm:$0xff]
        %v518 = vld [vmem:[#allocation5 + $0x4c0] sm:$0xff]
        %v519 = vld [vmem:[#allocation5 + $0x4c8] sm:$0xff]
        %v520 = vld [vmem:[#allocation5 + $0x4d0] sm:$0xff]
        %v521 = vld [vmem:[#allocation5 + $0x4d8] sm:$0xff]
        %v522 = vld [vmem:[#allocation5 + $0x4e0] sm:$0xff]
        %v523 = vld [vmem:[#allocation5 + $0x4e8] sm:$0xff]
        %v524 = vld [vmem:[#allocation5 + $0x4f0] sm:$0xff]
        %v525 = vld [vmem:[#allocation5 + $0x4f8] sm:$0xff]
        %v526 = vld [vmem:[#allocation5 + $0x500] sm:$0xff]
        %v527 = vld [vmem:[#allocation5 + $0x508] sm:$0xff]
        %v528 = vld [vmem:[#allocation5 + $0x510] sm:$0xff]
        %v529 = vld [vmem:[#allocation5 + $0x518] sm:$0xff]
        %v530 = vld [vmem:[#allocation5 + $0x520] sm:$0xff]
        %v531 = vld [vmem:[#allocation5 + $0x528] sm:$0xff]
        %v532 = vld [vmem:[#allocation5 + $0x530] sm:$0xff]
        %v533 = vld [vmem:[#allocation5 + $0x538] sm:$0xff]
        %v534 = vld [vmem:[#allocation5 + $0x540] sm:$0xff]
        %v535 = vld [vmem:[#allocation5 + $0x548] sm:$0xff]
        %v536 = vld [vmem:[#allocation5 + $0x550] sm:$0xff]
        %v537 = vld [vmem:[#allocation5 + $0x558] sm:$0xff]
        %v538 = vld [vmem:[#allocation5 + $0x560] sm:$0xff]
        %v539 = vld [vmem:[#allocation5 + $0x568] sm:$0xff]
        %v540 = vld [vmem:[#allocation5 + $0x570] sm:$0xff]
        %v541 = vld [vmem:[#allocation5 + $0x578] sm:$0xff]
        %v542 = vld [vmem:[#allocation5 + $0x580] sm:$0xff]
        %v543 = vld [vmem:[#allocation5 + $0x588] sm:$0xff]
        %v544 = vld [vmem:[#allocation5 + $0x590] sm:$0xff]
        %v545 = vld [vmem:[#allocation5 + $0x598] sm:$0xff]
        %v546 = vld [vmem:[#allocation5 + $0x5a0] sm:$0xff]
        %v547 = vld [vmem:[#allocation5 + $0x5a8] sm:$0xff]
        %v548 = vld [vmem:[#allocation5 + $0x5b0] sm:$0xff]
        %v549 = vld [vmem:[#allocation5 + $0x5b8] sm:$0xff]
        %v550 = vld [vmem:[#allocation5 + $0x5c0] sm:$0xff]
        %v551 = vld [vmem:[#allocation5 + $0x5c8] sm:$0xff]
        %v552 = vld [vmem:[#allocation5 + $0x5d0] sm:$0xff]
        %v553 = vld [vmem:[#allocation5 + $0x5d8] sm:$0xff]
        %v554 = vld [vmem:[#allocation5 + $0x5e0] sm:$0xff]
        %v555 = vld [vmem:[#allocation5 + $0x5e8] sm:$0xff]
        %v556 = vld [vmem:[#allocation5 + $0x5f0] sm:$0xff]
        %v557 = vld [vmem:[#allocation5 + $0x5f8] sm:$0xff]
        %v558 = vld [vmem:[#allocation5 + $0x600] sm:$0xff]
        %v559 = vld [vmem:[#allocation5 + $0x608] sm:$0xff]
        %v560 = vld [vmem:[#allocation5 + $0x610] sm:$0xff]
        %v561 = vld [vmem:[#allocation5 + $0x618] sm:$0xff]
        %v562 = vld [vmem:[%s2] sm:$0xf]
        %v564 = vlaneseq
        %v565 = vshrl.u32 %v564, 7
        %v566 = vsub.s32 0, %v565
        %v567 = vrot.slane %v562, %v566
        %v568 = vlaneseq
        %v569 = vshrl.u32 %v568, 7
        %v570 = vsub.s32 1, %v569
        %v571 = vrot.slane %v562, %v570
        %v572 = vlaneseq
        %v573 = vshrl.u32 %v572, 7
        %v574 = vsub.s32 2, %v573
        %v575 = vrot.slane %v562, %v574
        %v576 = vlaneseq
        %v577 = vshrl.u32 %v576, 7
        %v578 = vsub.s32 3, %v577
        %v579 = vrot.slane %v562, %v578
        %v780 = vunpack.c.l.b16 %v366
        %v781 = vunpack.c.h.b16 %v366
        %v782 = vunpack.c.l.b16 %v367
        %v783 = vunpack.c.h.b16 %v367
        %v784 = vunpack.c.l.b16 %v368
        %v785 = vunpack.c.h.b16 %v368
        %v786 = vunpack.c.l.b16 %v369
        %v787 = vunpack.c.h.b16 %v369
        %v788 = vunpack.c.l.b16 %v370
        %v789 = vunpack.c.h.b16 %v370
        %v790 = vunpack.c.l.b16 %v371
        %v791 = vunpack.c.h.b16 %v371
        %v792 = vunpack.c.l.b16 %v372
        %v793 = vunpack.c.h.b16 %v372
        %v794 = vunpack.c.l.b16 %v373
        %v795 = vunpack.c.h.b16 %v373
        %v796 = vunpack.c.l.b16 %v374
        %v797 = vunpack.c.h.b16 %v374
        %v798 = vunpack.c.l.b16 %v375
        %v799 = vunpack.c.h.b16 %v375
        %v800 = vunpack.c.l.b16 %v376
        %v801 = vunpack.c.h.b16 %v376
        %v802 = vunpack.c.l.b16 %v377
        %v803 = vunpack.c.h.b16 %v377
        %v804 = vunpack.c.l.b16 %v378
        %v805 = vunpack.c.h.b16 %v378
        %v806 = vunpack.c.l.b16 %v379
        %v807 = vunpack.c.h.b16 %v379
        %v808 = vunpack.c.l.b16 %v380
        %v809 = vunpack.c.h.b16 %v380
        %v810 = vunpack.c.l.b16 %v381
        %v811 = vunpack.c.h.b16 %v381
        %v812 = vunpack.c.l.b16 %v382
        %v813 = vunpack.c.h.b16 %v382
        %v814 = vunpack.c.l.b16 %v383
        %v815 = vunpack.c.h.b16 %v383
        %v816 = vunpack.c.l.b16 %v384
        %v817 = vunpack.c.h.b16 %v384
        %v818 = vunpack.c.l.b16 %v385
        %v819 = vunpack.c.h.b16 %v385
        %v820 = vunpack.c.l.b16 %v386
        %v821 = vunpack.c.h.b16 %v386
        %v822 = vunpack.c.l.b16 %v387
        %v823 = vunpack.c.h.b16 %v387
        %v824 = vunpack.c.l.b16 %v388
        %v825 = vunpack.c.h.b16 %v388
        %v826 = vunpack.c.l.b16 %v389
        %v827 = vunpack.c.h.b16 %v389
        %v828 = vunpack.c.l.b16 %v390
        %v829 = vunpack.c.h.b16 %v390
        %v830 = vunpack.c.l.b16 %v391
        %v831 = vunpack.c.h.b16 %v391
        %v832 = vunpack.c.l.b16 %v392
        %v833 = vunpack.c.h.b16 %v392
        %v834 = vunpack.c.l.b16 %v393
        %v835 = vunpack.c.h.b16 %v393
        %v836 = vunpack.c.l.b16 %v394
        %v837 = vunpack.c.h.b16 %v394
        %v838 = vunpack.c.l.b16 %v395
        %v839 = vunpack.c.h.b16 %v395
        %v840 = vunpack.c.l.b16 %v396
        %v841 = vunpack.c.h.b16 %v396
        %v842 = vunpack.c.l.b16 %v397
        %v843 = vunpack.c.h.b16 %v397
        %v844 = vunpack.c.l.b16 %v398
        %v845 = vunpack.c.h.b16 %v398
        %v846 = vunpack.c.l.b16 %v399
        %v847 = vunpack.c.h.b16 %v399
        %v848 = vunpack.c.l.b16 %v400
        %v849 = vunpack.c.h.b16 %v400
        %v850 = vunpack.c.l.b16 %v401
        %v851 = vunpack.c.h.b16 %v401
        %v852 = vunpack.c.l.b16 %v402
        %v853 = vunpack.c.h.b16 %v402
        %v854 = vunpack.c.l.b16 %v403
        %v855 = vunpack.c.h.b16 %v403
        %v856 = vunpack.c.l.b16 %v404
        %v857 = vunpack.c.h.b16 %v404
        %v858 = vunpack.c.l.b16 %v405
        %v859 = vunpack.c.h.b16 %v405
        %v860 = vunpack.c.l.b16 %v406
        %v861 = vunpack.c.h.b16 %v406
        %v862 = vunpack.c.l.b16 %v407
        %v863 = vunpack.c.h.b16 %v407
        %v864 = vunpack.c.l.b16 %v408
        %v865 = vunpack.c.h.b16 %v408
        %v866 = vunpack.c.l.b16 %v409
        %v867 = vunpack.c.h.b16 %v409
        %v868 = vunpack.c.l.b16 %v410
        %v869 = vunpack.c.h.b16 %v410
        %v870 = vunpack.c.l.b16 %v411
        %v871 = vunpack.c.h.b16 %v411
        %v872 = vunpack.c.l.b16 %v412
        %v873 = vunpack.c.h.b16 %v412
        %v874 = vunpack.c.l.b16 %v413
        %v875 = vunpack.c.h.b16 %v413
        %v876 = vunpack.c.l.b16 %v414
        %v877 = vunpack.c.h.b16 %v414
        %v878 = vunpack.c.l.b16 %v415
        %v879 = vunpack.c.h.b16 %v415
        %v880 = vunpack.c.l.b16 %v416
        %v881 = vunpack.c.h.b16 %v416
        %v882 = vunpack.c.l.b16 %v417
        %v883 = vunpack.c.h.b16 %v417
        %v884 = vunpack.c.l.b16 %v418
        %v885 = vunpack.c.h.b16 %v418
        %v886 = vunpack.c.l.b16 %v419
        %v887 = vunpack.c.h.b16 %v419
        %v888 = vunpack.c.l.b16 %v420
        %v889 = vunpack.c.h.b16 %v420
        %v890 = vunpack.c.l.b16 %v421
        %v891 = vunpack.c.h.b16 %v421
        %v892 = vunpack.c.l.b16 %v422
        %v893 = vunpack.c.h.b16 %v422
        %v894 = vunpack.c.l.b16 %v423
        %v895 = vunpack.c.h.b16 %v423
        %v896 = vunpack.c.l.b16 %v424
        %v897 = vunpack.c.h.b16 %v424
        %v898 = vunpack.c.l.b16 %v425
        %v899 = vunpack.c.h.b16 %v425
        %v900 = vunpack.c.l.b16 %v426
        %v901 = vunpack.c.h.b16 %v426
        %v902 = vunpack.c.l.b16 %v427
        %v903 = vunpack.c.h.b16 %v427
        %v904 = vunpack.c.l.b16 %v428
        %v905 = vunpack.c.h.b16 %v428
        %v906 = vunpack.c.l.b16 %v429
        %v907 = vunpack.c.h.b16 %v429
        %v908 = vunpack.c.l.b16 %v430
        %v909 = vunpack.c.h.b16 %v430
        %v910 = vunpack.c.l.b16 %v431
        %v911 = vunpack.c.h.b16 %v431
        %v912 = vunpack.c.l.b16 %v432
        %v913 = vunpack.c.h.b16 %v432
        %v914 = vunpack.c.l.b16 %v433
        %v915 = vunpack.c.h.b16 %v433
        %v916 = vunpack.c.l.b16 %v434
        %v917 = vunpack.c.h.b16 %v434
        %v918 = vunpack.c.l.b16 %v435
        %v919 = vunpack.c.h.b16 %v435
        %v920 = vunpack.c.l.b16 %v436
        %v921 = vunpack.c.h.b16 %v436
        %v922 = vunpack.c.l.b16 %v437
        %v923 = vunpack.c.h.b16 %v437
        %v924 = vunpack.c.l.b16 %v438
        %v925 = vunpack.c.h.b16 %v438
        %v926 = vunpack.c.l.b16 %v439
        %v927 = vunpack.c.h.b16 %v439
        %v928 = vunpack.c.l.b16 %v440
        %v929 = vunpack.c.h.b16 %v440
        %v930 = vunpack.c.l.b16 %v441
        %v931 = vunpack.c.h.b16 %v441
        %v932 = vunpack.c.l.b16 %v442
        %v933 = vunpack.c.h.b16 %v442
        %v934 = vunpack.c.l.b16 %v443
        %v935 = vunpack.c.h.b16 %v443
        %v936 = vunpack.c.l.b16 %v444
        %v937 = vunpack.c.h.b16 %v444
        %v938 = vunpack.c.l.b16 %v445
        %v939 = vunpack.c.h.b16 %v445
        %v940 = vunpack.c.l.b16 %v446
        %v941 = vunpack.c.h.b16 %v446
        %v942 = vunpack.c.l.b16 %v447
        %v943 = vunpack.c.h.b16 %v447
        %v944 = vunpack.c.l.b16 %v448
        %v945 = vunpack.c.h.b16 %v448
        %v946 = vunpack.c.l.b16 %v449
        %v947 = vunpack.c.h.b16 %v449
        %v948 = vunpack.c.l.b16 %v450
        %v949 = vunpack.c.h.b16 %v450
        %v950 = vunpack.c.l.b16 %v451
        %v951 = vunpack.c.h.b16 %v451
        %v952 = vunpack.c.l.b16 %v452
        %v953 = vunpack.c.h.b16 %v452
        %v954 = vunpack.c.l.b16 %v453
        %v955 = vunpack.c.h.b16 %v453
        %v956 = vunpack.c.l.b16 %v454
        %v957 = vunpack.c.h.b16 %v454
        %v958 = vunpack.c.l.b16 %v455
        %v959 = vunpack.c.h.b16 %v455
        %v960 = vunpack.c.l.b16 %v456
        %v961 = vunpack.c.h.b16 %v456
        %v962 = vunpack.c.l.b16 %v457
        %v963 = vunpack.c.h.b16 %v457
        %v964 = vunpack.c.l.b16 %v458
        %v965 = vunpack.c.h.b16 %v458
        %v966 = vunpack.c.l.b16 %v459
        %v967 = vunpack.c.h.b16 %v459
        %v968 = vunpack.c.l.b16 %v460
        %v969 = vunpack.c.h.b16 %v460
        %v970 = vunpack.c.l.b16 %v461
        %v971 = vunpack.c.h.b16 %v461
        %v972 = vunpack.c.l.b16 %v462
        %v973 = vunpack.c.h.b16 %v462
        %v974 = vunpack.c.l.b16 %v463
        %v975 = vunpack.c.h.b16 %v463
        %v976 = vunpack.c.l.b16 %v464
        %v977 = vunpack.c.h.b16 %v464
        %v978 = vunpack.c.l.b16 %v465
        %v979 = vunpack.c.h.b16 %v465
        %v980 = vunpack.c.l.b16 %v466
        %v981 = vunpack.c.h.b16 %v466
        %v982 = vunpack.c.l.b16 %v467
        %v983 = vunpack.c.h.b16 %v467
        %v984 = vunpack.c.l.b16 %v468
        %v985 = vunpack.c.h.b16 %v468
        %v986 = vunpack.c.l.b16 %v469
        %v987 = vunpack.c.h.b16 %v469
        %v988 = vunpack.c.l.b16 %v470
        %v989 = vunpack.c.h.b16 %v470
        %v990 = vunpack.c.l.b16 %v471
        %v991 = vunpack.c.h.b16 %v471
        %v992 = vunpack.c.l.b16 %v472
        %v993 = vunpack.c.h.b16 %v472
        %v994 = vunpack.c.l.b16 %v473
        %v995 = vunpack.c.h.b16 %v473
        %v996 = vunpack.c.l.b16 %v474
        %v997 = vunpack.c.h.b16 %v474
        %v998 = vunpack.c.l.b16 %v475
        %v999 = vunpack.c.h.b16 %v475
        %v1000 = vunpack.c.l.b16 %v476
        %v1001 = vunpack.c.h.b16 %v476
        %v1002 = vunpack.c.l.b16 %v477
        %v1003 = vunpack.c.h.b16 %v477
        %v1004 = vunpack.c.l.b16 %v478
        %v1005 = vunpack.c.h.b16 %v478
        %v1006 = vunpack.c.l.b16 %v479
        %v1007 = vunpack.c.h.b16 %v479
        %v1008 = vunpack.c.l.b16 %v480
        %v1009 = vunpack.c.h.b16 %v480
        %v1010 = vunpack.c.l.b16 %v481
        %v1011 = vunpack.c.h.b16 %v481
        %v1012 = vunpack.c.l.b16 %v482
        %v1013 = vunpack.c.h.b16 %v482
        %v1014 = vunpack.c.l.b16 %v483
        %v1015 = vunpack.c.h.b16 %v483
        %v1016 = vunpack.c.l.b16 %v484
        %v1017 = vunpack.c.h.b16 %v484
        %v1018 = vunpack.c.l.b16 %v485
        %v1019 = vunpack.c.h.b16 %v485
        %v1020 = vunpack.c.l.b16 %v486
        %v1021 = vunpack.c.h.b16 %v486
        %v1022 = vunpack.c.l.b16 %v487
        %v1023 = vunpack.c.h.b16 %v487
        %v1024 = vunpack.c.l.b16 %v488
        %v1025 = vunpack.c.h.b16 %v488
        %v1026 = vunpack.c.l.b16 %v489
        %v1027 = vunpack.c.h.b16 %v489
        %v1028 = vunpack.c.l.b16 %v490
        %v1029 = vunpack.c.h.b16 %v490
        %v1030 = vunpack.c.l.b16 %v491
        %v1031 = vunpack.c.h.b16 %v491
        %v1032 = vunpack.c.l.b16 %v492
        %v1033 = vunpack.c.h.b16 %v492
        %v1034 = vunpack.c.l.b16 %v493
        %v1035 = vunpack.c.h.b16 %v493
        %v1036 = vunpack.c.l.b16 %v494
        %v1037 = vunpack.c.h.b16 %v494
        %v1038 = vunpack.c.l.b16 %v495
        %v1039 = vunpack.c.h.b16 %v495
        %v1040 = vunpack.c.l.b16 %v496
        %v1041 = vunpack.c.h.b16 %v496
        %v1042 = vunpack.c.l.b16 %v497
        %v1043 = vunpack.c.h.b16 %v497
        %v1044 = vunpack.c.l.b16 %v498
        %v1045 = vunpack.c.h.b16 %v498
        %v1046 = vunpack.c.l.b16 %v499
        %v1047 = vunpack.c.h.b16 %v499
        %v1048 = vunpack.c.l.b16 %v500
        %v1049 = vunpack.c.h.b16 %v500
        %v1050 = vunpack.c.l.b16 %v501
        %v1051 = vunpack.c.h.b16 %v501
        %v1052 = vunpack.c.l.b16 %v502
        %v1053 = vunpack.c.h.b16 %v502
        %v1054 = vunpack.c.l.b16 %v503
        %v1055 = vunpack.c.h.b16 %v503
        %v1056 = vunpack.c.l.b16 %v504
        %v1057 = vunpack.c.h.b16 %v504
        %v1058 = vunpack.c.l.b16 %v505
        %v1059 = vunpack.c.h.b16 %v505
        %v1060 = vunpack.c.l.b16 %v506
        %v1061 = vunpack.c.h.b16 %v506
        %v1062 = vunpack.c.l.b16 %v507
        %v1063 = vunpack.c.h.b16 %v507
        %v1064 = vunpack.c.l.b16 %v508
        %v1065 = vunpack.c.h.b16 %v508
        %v1066 = vunpack.c.l.b16 %v509
        %v1067 = vunpack.c.h.b16 %v509
        %v1068 = vunpack.c.l.b16 %v510
        %v1069 = vunpack.c.h.b16 %v510
        %v1070 = vunpack.c.l.b16 %v511
        %v1071 = vunpack.c.h.b16 %v511
        %v1072 = vunpack.c.l.b16 %v512
        %v1073 = vunpack.c.h.b16 %v512
        %v1074 = vunpack.c.l.b16 %v513
        %v1075 = vunpack.c.h.b16 %v513
        %v1076 = vunpack.c.l.b16 %v514
        %v1077 = vunpack.c.h.b16 %v514
        %v1078 = vunpack.c.l.b16 %v515
        %v1079 = vunpack.c.h.b16 %v515
        %v1080 = vunpack.c.l.b16 %v516
        %v1081 = vunpack.c.h.b16 %v516
        %v1082 = vunpack.c.l.b16 %v517
        %v1083 = vunpack.c.h.b16 %v517
        %v1084 = vunpack.c.l.b16 %v518
        %v1085 = vunpack.c.h.b16 %v518
        %v1086 = vunpack.c.l.b16 %v519
        %v1087 = vunpack.c.h.b16 %v519
        %v1088 = vunpack.c.l.b16 %v520
        %v1089 = vunpack.c.h.b16 %v520
        %v1090 = vunpack.c.l.b16 %v521
        %v1091 = vunpack.c.h.b16 %v521
        %v1092 = vunpack.c.l.b16 %v522
        %v1093 = vunpack.c.h.b16 %v522
        %v1094 = vunpack.c.l.b16 %v523
        %v1095 = vunpack.c.h.b16 %v523
        %v1096 = vunpack.c.l.b16 %v524
        %v1097 = vunpack.c.h.b16 %v524
        %v1098 = vunpack.c.l.b16 %v525
        %v1099 = vunpack.c.h.b16 %v525
        %v1100 = vunpack.c.l.b16 %v526
        %v1101 = vunpack.c.h.b16 %v526
        %v1102 = vunpack.c.l.b16 %v527
        %v1103 = vunpack.c.h.b16 %v527
        %v1104 = vunpack.c.l.b16 %v528
        %v1105 = vunpack.c.h.b16 %v528
        %v1106 = vunpack.c.l.b16 %v529
        %v1107 = vunpack.c.h.b16 %v529
        %v1108 = vunpack.c.l.b16 %v530
        %v1109 = vunpack.c.h.b16 %v530
        %v1110 = vunpack.c.l.b16 %v531
        %v1111 = vunpack.c.h.b16 %v531
        %v1112 = vunpack.c.l.b16 %v532
        %v1113 = vunpack.c.h.b16 %v532
        %v1114 = vunpack.c.l.b16 %v533
        %v1115 = vunpack.c.h.b16 %v533
        %v1116 = vunpack.c.l.b16 %v534
        %v1117 = vunpack.c.h.b16 %v534
        %v1118 = vunpack.c.l.b16 %v535
        %v1119 = vunpack.c.h.b16 %v535
        %v1120 = vunpack.c.l.b16 %v536
        %v1121 = vunpack.c.h.b16 %v536
        %v1122 = vunpack.c.l.b16 %v537
        %v1123 = vunpack.c.h.b16 %v537
        %v1124 = vunpack.c.l.b16 %v538
        %v1125 = vunpack.c.h.b16 %v538
        %v1126 = vunpack.c.l.b16 %v539
        %v1127 = vunpack.c.h.b16 %v539
        %v1128 = vunpack.c.l.b16 %v540
        %v1129 = vunpack.c.h.b16 %v540
        %v1130 = vunpack.c.l.b16 %v541
        %v1131 = vunpack.c.h.b16 %v541
        %v1132 = vunpack.c.l.b16 %v542
        %v1133 = vunpack.c.h.b16 %v542
        %v1134 = vunpack.c.l.b16 %v543
        %v1135 = vunpack.c.h.b16 %v543
        %v1136 = vunpack.c.l.b16 %v544
        %v1137 = vunpack.c.h.b16 %v544
        %v1138 = vunpack.c.l.b16 %v545
        %v1139 = vunpack.c.h.b16 %v545
        %v1140 = vunpack.c.l.b16 %v546
        %v1141 = vunpack.c.h.b16 %v546
        %v1142 = vunpack.c.l.b16 %v547
        %v1143 = vunpack.c.h.b16 %v547
        %v1144 = vunpack.c.l.b16 %v548
        %v1145 = vunpack.c.h.b16 %v548
        %v1146 = vunpack.c.l.b16 %v549
        %v1147 = vunpack.c.h.b16 %v549
        %v1148 = vunpack.c.l.b16 %v550
        %v1149 = vunpack.c.h.b16 %v550
        %v1150 = vunpack.c.l.b16 %v551
        %v1151 = vunpack.c.h.b16 %v551
        %v1152 = vunpack.c.l.b16 %v552
        %v1153 = vunpack.c.h.b16 %v552
        %v1154 = vunpack.c.l.b16 %v553
        %v1155 = vunpack.c.h.b16 %v553
        %v1156 = vunpack.c.l.b16 %v554
        %v1157 = vunpack.c.h.b16 %v554
        %v1158 = vunpack.c.l.b16 %v555
        %v1159 = vunpack.c.h.b16 %v555
        %v1160 = vunpack.c.l.b16 %v556
        %v1161 = vunpack.c.h.b16 %v556
        %v1162 = vunpack.c.l.b16 %v557
        %v1163 = vunpack.c.h.b16 %v557
        %v1164 = vunpack.c.l.b16 %v558
        %v1165 = vunpack.c.h.b16 %v558
        %v1166 = vunpack.c.l.b16 %v559
        %v1167 = vunpack.c.h.b16 %v559
        %v1168 = vunpack.c.l.b16 %v560
        %v1169 = vunpack.c.h.b16 %v560
        %v1170 = vunpack.c.l.b16 %v561
        %v1171 = vunpack.c.h.b16 %v561
        %v1172 = vpack.c.b16 %v784, %v780
        %v1173 = vpack.c.b16 %v785, %v781
        %v1174 = vpack.c.b16 %v786, %v782
        %v1175 = vpack.c.b16 %v787, %v783
        %v1176 = vpack.c.b16 %v792, %v788
        %v1177 = vpack.c.b16 %v793, %v789
        %v1178 = vpack.c.b16 %v794, %v790
        %v1179 = vpack.c.b16 %v795, %v791
        %v1180 = vpack.c.b16 %v800, %v796
        %v1181 = vpack.c.b16 %v801, %v797
        %v1182 = vpack.c.b16 %v802, %v798
        %v1183 = vpack.c.b16 %v803, %v799
        %v1184 = vpack.c.b16 %v808, %v804
        %v1185 = vpack.c.b16 %v809, %v805
        %v1186 = vpack.c.b16 %v810, %v806
        %v1187 = vpack.c.b16 %v811, %v807
        %v1188 = vpack.c.b16 %v816, %v812
        %v1189 = vpack.c.b16 %v817, %v813
        %v1190 = vpack.c.b16 %v818, %v814
        %v1191 = vpack.c.b16 %v819, %v815
        %v1192 = vpack.c.b16 %v824, %v820
        %v1193 = vpack.c.b16 %v825, %v821
        %v1194 = vpack.c.b16 %v826, %v822
        %v1195 = vpack.c.b16 %v827, %v823
        %v1196 = vpack.c.b16 %v832, %v828
        %v1197 = vpack.c.b16 %v833, %v829
        %v1198 = vpack.c.b16 %v834, %v830
        %v1199 = vpack.c.b16 %v835, %v831
        %v1200 = vpack.c.b16 %v840, %v836
        %v1201 = vpack.c.b16 %v841, %v837
        %v1202 = vpack.c.b16 %v842, %v838
        %v1203 = vpack.c.b16 %v843, %v839
        %v1204 = vpack.c.b16 %v848, %v844
        %v1205 = vpack.c.b16 %v849, %v845
        %v1206 = vpack.c.b16 %v850, %v846
        %v1207 = vpack.c.b16 %v851, %v847
        %v1208 = vpack.c.b16 %v856, %v852
        %v1209 = vpack.c.b16 %v857, %v853
        %v1210 = vpack.c.b16 %v858, %v854
        %v1211 = vpack.c.b16 %v859, %v855
        %v1212 = vpack.c.b16 %v864, %v860
        %v1213 = vpack.c.b16 %v865, %v861
        %v1214 = vpack.c.b16 %v866, %v862
        %v1215 = vpack.c.b16 %v867, %v863
        %v1216 = vpack.c.b16 %v872, %v868
        %v1217 = vpack.c.b16 %v873, %v869
        %v1218 = vpack.c.b16 %v874, %v870
        %v1219 = vpack.c.b16 %v875, %v871
        %v1220 = vpack.c.b16 %v880, %v876
        %v1221 = vpack.c.b16 %v881, %v877
        %v1222 = vpack.c.b16 %v882, %v878
        %v1223 = vpack.c.b16 %v883, %v879
        %v1224 = vpack.c.b16 %v888, %v884
        %v1225 = vpack.c.b16 %v889, %v885
        %v1226 = vpack.c.b16 %v890, %v886
        %v1227 = vpack.c.b16 %v891, %v887
        %v1228 = vpack.c.b16 %v896, %v892
        %v1229 = vpack.c.b16 %v897, %v893
        %v1230 = vpack.c.b16 %v898, %v894
        %v1231 = vpack.c.b16 %v899, %v895
        %v1232 = vpack.c.b16 %v904, %v900
        %v1233 = vpack.c.b16 %v905, %v901
        %v1234 = vpack.c.b16 %v906, %v902
        %v1235 = vpack.c.b16 %v907, %v903
        %v1236 = vpack.c.b16 %v912, %v908
        %v1237 = vpack.c.b16 %v913, %v909
        %v1238 = vpack.c.b16 %v914, %v910
        %v1239 = vpack.c.b16 %v915, %v911
        %v1240 = vpack.c.b16 %v920, %v916
        %v1241 = vpack.c.b16 %v921, %v917
        %v1242 = vpack.c.b16 %v922, %v918
        %v1243 = vpack.c.b16 %v923, %v919
        %v1244 = vpack.c.b16 %v928, %v924
        %v1245 = vpack.c.b16 %v929, %v925
        %v1246 = vpack.c.b16 %v930, %v926
        %v1247 = vpack.c.b16 %v931, %v927
        %v1248 = vpack.c.b16 %v936, %v932
        %v1249 = vpack.c.b16 %v937, %v933
        %v1250 = vpack.c.b16 %v938, %v934
        %v1251 = vpack.c.b16 %v939, %v935
        %v1252 = vpack.c.b16 %v944, %v940
        %v1253 = vpack.c.b16 %v945, %v941
        %v1254 = vpack.c.b16 %v946, %v942
        %v1255 = vpack.c.b16 %v947, %v943
        %v1256 = vpack.c.b16 %v952, %v948
        %v1257 = vpack.c.b16 %v953, %v949
        %v1258 = vpack.c.b16 %v954, %v950
        %v1259 = vpack.c.b16 %v955, %v951
        %v1260 = vpack.c.b16 %v960, %v956
        %v1261 = vpack.c.b16 %v961, %v957
        %v1262 = vpack.c.b16 %v962, %v958
        %v1263 = vpack.c.b16 %v963, %v959
        %v1264 = vpack.c.b16 %v968, %v964
        %v1265 = vpack.c.b16 %v969, %v965
        %v1266 = vpack.c.b16 %v970, %v966
        %v1267 = vpack.c.b16 %v971, %v967
        %v1268 = vpack.c.b16 %v976, %v972
        %v1269 = vpack.c.b16 %v977, %v973
        %v1270 = vpack.c.b16 %v978, %v974
        %v1271 = vpack.c.b16 %v979, %v975
        %v1272 = vpack.c.b16 %v984, %v980
        %v1273 = vpack.c.b16 %v985, %v981
        %v1274 = vpack.c.b16 %v986, %v982
        %v1275 = vpack.c.b16 %v987, %v983
        %v1276 = vpack.c.b16 %v992, %v988
        %v1277 = vpack.c.b16 %v993, %v989
        %v1278 = vpack.c.b16 %v994, %v990
        %v1279 = vpack.c.b16 %v995, %v991
        %v1280 = vpack.c.b16 %v1000, %v996
        %v1281 = vpack.c.b16 %v1001, %v997
        %v1282 = vpack.c.b16 %v1002, %v998
        %v1283 = vpack.c.b16 %v1003, %v999
        %v1284 = vpack.c.b16 %v1008, %v1004
        %v1285 = vpack.c.b16 %v1009, %v1005
        %v1286 = vpack.c.b16 %v1010, %v1006
        %v1287 = vpack.c.b16 %v1011, %v1007
        %v1288 = vpack.c.b16 %v1016, %v1012
        %v1289 = vpack.c.b16 %v1017, %v1013
        %v1290 = vpack.c.b16 %v1018, %v1014
        %v1291 = vpack.c.b16 %v1019, %v1015
        %v1292 = vpack.c.b16 %v1024, %v1020
        %v1293 = vpack.c.b16 %v1025, %v1021
        %v1294 = vpack.c.b16 %v1026, %v1022
        %v1295 = vpack.c.b16 %v1027, %v1023
        %v1296 = vpack.c.b16 %v1032, %v1028
        %v1297 = vpack.c.b16 %v1033, %v1029
        %v1298 = vpack.c.b16 %v1034, %v1030
        %v1299 = vpack.c.b16 %v1035, %v1031
        %v1300 = vpack.c.b16 %v1040, %v1036
        %v1301 = vpack.c.b16 %v1041, %v1037
        %v1302 = vpack.c.b16 %v1042, %v1038
        %v1303 = vpack.c.b16 %v1043, %v1039
        %v1304 = vpack.c.b16 %v1048, %v1044
        %v1305 = vpack.c.b16 %v1049, %v1045
        %v1306 = vpack.c.b16 %v1050, %v1046
        %v1307 = vpack.c.b16 %v1051, %v1047
        %v1308 = vpack.c.b16 %v1056, %v1052
        %v1309 = vpack.c.b16 %v1057, %v1053
        %v1310 = vpack.c.b16 %v1058, %v1054
        %v1311 = vpack.c.b16 %v1059, %v1055
        %v1312 = vpack.c.b16 %v1064, %v1060
        %v1313 = vpack.c.b16 %v1065, %v1061
        %v1314 = vpack.c.b16 %v1066, %v1062
        %v1315 = vpack.c.b16 %v1067, %v1063
        %v1316 = vpack.c.b16 %v1072, %v1068
        %v1317 = vpack.c.b16 %v1073, %v1069
        %v1318 = vpack.c.b16 %v1074, %v1070
        %v1319 = vpack.c.b16 %v1075, %v1071
        %v1320 = vpack.c.b16 %v1080, %v1076
        %v1321 = vpack.c.b16 %v1081, %v1077
        %v1322 = vpack.c.b16 %v1082, %v1078
        %v1323 = vpack.c.b16 %v1083, %v1079
        %v1324 = vpack.c.b16 %v1088, %v1084
        %v1325 = vpack.c.b16 %v1089, %v1085
        %v1326 = vpack.c.b16 %v1090, %v1086
        %v1327 = vpack.c.b16 %v1091, %v1087
        %v1328 = vpack.c.b16 %v1096, %v1092
        %v1329 = vpack.c.b16 %v1097, %v1093
        %v1330 = vpack.c.b16 %v1098, %v1094
        %v1331 = vpack.c.b16 %v1099, %v1095
        %v1332 = vpack.c.b16 %v1104, %v1100
        %v1333 = vpack.c.b16 %v1105, %v1101
        %v1334 = vpack.c.b16 %v1106, %v1102
        %v1335 = vpack.c.b16 %v1107, %v1103
        %v1336 = vpack.c.b16 %v1112, %v1108
        %v1337 = vpack.c.b16 %v1113, %v1109
        %v1338 = vpack.c.b16 %v1114, %v1110
        %v1339 = vpack.c.b16 %v1115, %v1111
        %v1340 = vpack.c.b16 %v1120, %v1116
        %v1341 = vpack.c.b16 %v1121, %v1117
        %v1342 = vpack.c.b16 %v1122, %v1118
        %v1343 = vpack.c.b16 %v1123, %v1119
        %v1344 = vpack.c.b16 %v1128, %v1124
        %v1345 = vpack.c.b16 %v1129, %v1125
        %v1346 = vpack.c.b16 %v1130, %v1126
        %v1347 = vpack.c.b16 %v1131, %v1127
        %v1348 = vpack.c.b16 %v1136, %v1132
        %v1349 = vpack.c.b16 %v1137, %v1133
        %v1350 = vpack.c.b16 %v1138, %v1134
        %v1351 = vpack.c.b16 %v1139, %v1135
        %v1352 = vpack.c.b16 %v1144, %v1140
        %v1353 = vpack.c.b16 %v1145, %v1141
        %v1354 = vpack.c.b16 %v1146, %v1142
        %v1355 = vpack.c.b16 %v1147, %v1143
        %v1356 = vpack.c.b16 %v1152, %v1148
        %v1357 = vpack.c.b16 %v1153, %v1149
        %v1358 = vpack.c.b16 %v1154, %v1150
        %v1359 = vpack.c.b16 %v1155, %v1151
        %v1360 = vpack.c.b16 %v1160, %v1156
        %v1361 = vpack.c.b16 %v1161, %v1157
        %v1362 = vpack.c.b16 %v1162, %v1158
        %v1363 = vpack.c.b16 %v1163, %v1159
        %v1364 = vpack.c.b16 %v1168, %v1164
        %v1365 = vpack.c.b16 %v1169, %v1165
        %v1366 = vpack.c.b16 %v1170, %v1166
        %v1367 = vpack.c.b16 %v1171, %v1167
        %vm1564 = vcmask 130048
        %v1566 = vsel %vm1564, %v365, 0
        %1568 = vmatprep.subr.bf16.mxu0 %v1173
        %1569 = vmatpush1.bf16.msra.mxu0 %v1172
        %1570 = vmatprep.subr.bf16.mxu0 %v1177
        %1571 = vmatpush1.bf16.msra.mxu0 %v1176
        %1572 = vmatprep.subr.bf16.mxu0 %v1181
        %1573 = vmatpush1.bf16.msra.mxu0 %v1180
        %1574 = vmatprep.subr.bf16.mxu0 %v1185
        %1575 = vmatpush1.bf16.msra.mxu0 %v1184
        %1576 = vmatprep.subr.bf16.mxu0 %v1189
        %1577 = vmatpush1.bf16.msra.mxu0 %v1188
        %1578 = vmatprep.subr.bf16.mxu0 %v1193
        %1579 = vmatpush1.bf16.msra.mxu0 %v1192
        %1580 = vmatprep.subr.bf16.mxu0 %v1197
        %1581 = vmatpush1.bf16.msra.mxu0 %v1196
        %1582 = vmatprep.subr.bf16.mxu0 %v1201
        %1583 = vmatpush1.bf16.msra.mxu0 %v1200
        %1584 = vmatprep.subr.bf16.mxu0 %v1205
        %1585 = vmatpush1.bf16.msra.mxu0 %v1204
        %1586 = vmatprep.subr.bf16.mxu0 %v1209
        %1587 = vmatpush1.bf16.msra.mxu0 %v1208
        %1588 = vmatprep.subr.bf16.mxu0 %v1213
        %1589 = vmatpush1.bf16.msra.mxu0 %v1212
        %1590 = vmatprep.subr.bf16.mxu0 %v1217
        %1591 = vmatpush1.bf16.msra.mxu0 %v1216
        %1592 = vmatprep.subr.bf16.mxu0 %v1221
        %1593 = vmatpush1.bf16.msra.mxu0 %v1220
        %1594 = vmatprep.subr.bf16.mxu0 %v1225
        %1595 = vmatpush1.bf16.msra.mxu0 %v1224
        %1596 = vmatprep.subr.bf16.mxu0 %v1229
        %1597 = vmatpush1.bf16.msra.mxu0 %v1228
        %1598 = vmatprep.subr.bf16.mxu0 %v1233
        %1599 = vmatpush1.bf16.msra.mxu0 %v1232
        %1600 = vmatprep.mubr.bf16.mxu0 %v360
        %1601 = vmatmul.mubr.bf16.gmra.mrb[0].mxu0 %v359
        %v1602 = vpop.f32.mrb[0].mxu0
        %v1603 = vadd.f32 %v567, %v1602
        %v1604 = vpop.f32.mrb[0].mxu0
        %v1605 = vadd.f32 %v571, %v1604
        %v1606 = vpop.f32.mrb[0].mxu0
        %v1607 = vadd.f32 %v567, %v1606
        %v1608 = vpop.f32.mrb[0].mxu0
        %v1609 = vadd.f32 %v571, %v1608
        %1610 = vdwg.mxu0
        %1611 = vmatprep.subr.bf16.mxu0 %v1237
        %1612 = vmatpush1.bf16.msra.mxu0 %v1236
        %1613 = vmatprep.subr.bf16.mxu0 %v1241
        %1614 = vmatpush1.bf16.msra.mxu0 %v1240
        %1615 = vmatprep.subr.bf16.mxu0 %v1245
        %1616 = vmatpush1.bf16.msra.mxu0 %v1244
        %1617 = vmatprep.subr.bf16.mxu0 %v1249
        %1618 = vmatpush1.bf16.msra.mxu0 %v1248
        %1619 = vmatprep.subr.bf16.mxu0 %v1253
        %1620 = vmatpush1.bf16.msra.mxu0 %v1252
        %1621 = vmatprep.subr.bf16.mxu0 %v1257
        %1622 = vmatpush1.bf16.msra.mxu0 %v1256
        %1623 = vmatprep.subr.bf16.mxu0 %v1261
        %1624 = vmatpush1.bf16.msra.mxu0 %v1260
        %1625 = vmatprep.subr.bf16.mxu0 %v1265
        %1626 = vmatpush1.bf16.msra.mxu0 %v1264
        %1627 = vmatprep.subr.bf16.mxu0 %v1269
        %1628 = vmatpush1.bf16.msra.mxu0 %v1268
        %1629 = vmatprep.subr.bf16.mxu0 %v1273
        %1630 = vmatpush1.bf16.msra.mxu0 %v1272
        %1631 = vmatprep.subr.bf16.mxu0 %v1277
        %1632 = vmatpush1.bf16.msra.mxu0 %v1276
        %1633 = vmatprep.subr.bf16.mxu0 %v1281
        %1634 = vmatpush1.bf16.msra.mxu0 %v1280
        %1635 = vmatprep.subr.bf16.mxu0 %v1285
        %1636 = vmatpush1.bf16.msra.mxu0 %v1284
        %1637 = vmatprep.subr.bf16.mxu0 %v1289
        %1638 = vmatpush1.bf16.msra.mxu0 %v1288
        %1639 = vmatprep.subr.bf16.mxu0 %v1293
        %1640 = vmatpush1.bf16.msra.mxu0 %v1292
        %1641 = vmatprep.subr.bf16.mxu0 %v1297
        %1642 = vmatpush1.bf16.msra.mxu0 %v1296
        %1643 = vmatprep.mubr.bf16.mxu0 %v362
        %1644 = vmatmul.mubr.bf16.gmra.mrb[0].mxu0 %v361
        %v1645 = vpop.f32.mrb[0].mxu0
        %v1646 = vadd.f32 %v1603, %v1645
        %v1647 = vpop.f32.mrb[0].mxu0
        %v1648 = vadd.f32 %v1605, %v1647
        %v1649 = vpop.f32.mrb[0].mxu0
        %v1650 = vadd.f32 %v1607, %v1649
        %v1651 = vpop.f32.mrb[0].mxu0
        %v1652 = vadd.f32 %v1609, %v1651
        %1653 = vdwg.mxu0
        %1654 = vmatprep.subr.bf16.mxu0 %v1301
        %1655 = vmatpush1.bf16.msra.mxu0 %v1300
        %1656 = vmatprep.subr.bf16.mxu0 %v1305
        %1657 = vmatpush1.bf16.msra.mxu0 %v1304
        %1658 = vmatprep.subr.bf16.mxu0 %v1309
        %1659 = vmatpush1.bf16.msra.mxu0 %v1308
        %1660 = vmatprep.subr.bf16.mxu0 %v1313
        %1661 = vmatpush1.bf16.msra.mxu0 %v1312
        %1662 = vmatprep.subr.bf16.mxu0 %v1317
        %1663 = vmatpush1.bf16.msra.mxu0 %v1316
        %1664 = vmatprep.subr.bf16.mxu0 %v1321
        %1665 = vmatpush1.bf16.msra.mxu0 %v1320
        %1666 = vmatprep.subr.bf16.mxu0 %v1325
        %1667 = vmatpush1.bf16.msra.mxu0 %v1324
        %1668 = vmatprep.subr.bf16.mxu0 %v1329
        %1669 = vmatpush1.bf16.msra.mxu0 %v1328
        %1670 = vmatprep.subr.bf16.mxu0 %v1333
        %1671 = vmatpush1.bf16.msra.mxu0 %v1332
        %1672 = vmatprep.subr.bf16.mxu0 %v1337
        %1673 = vmatpush1.bf16.msra.mxu0 %v1336
        %1674 = vmatprep.subr.bf16.mxu0 %v1341
        %1675 = vmatpush1.bf16.msra.mxu0 %v1340
        %1676 = vmatprep.subr.bf16.mxu0 %v1345
        %1677 = vmatpush1.bf16.msra.mxu0 %v1344
        %1678 = vmatprep.subr.bf16.mxu0 %v1349
        %1679 = vmatpush1.bf16.msra.mxu0 %v1348
        %1680 = vmatprep.subr.bf16.mxu0 %v1353
        %1681 = vmatpush1.bf16.msra.mxu0 %v1352
        %1682 = vmatprep.subr.bf16.mxu0 %v1357
        %1683 = vmatpush1.bf16.msra.mxu0 %v1356
        %1684 = vmatprep.subr.bf16.mxu0 %v1361
        %1685 = vmatpush1.bf16.msra.mxu0 %v1360
        %1686 = vmatprep.mubr.bf16.mxu0 %v364
        %1687 = vmatmul.mubr.bf16.gmra.mrb[0].mxu0 %v363
        %v1688 = vpop.f32.mrb[0].mxu0
        %v1689 = vadd.f32 %v1646, %v1688
        %v1690 = vpop.f32.mrb[0].mxu0
        %v1691 = vadd.f32 %v1648, %v1690
        %v1692 = vpop.f32.mrb[0].mxu0
        %v1693 = vadd.f32 %v1650, %v1692
        %v1694 = vpop.f32.mrb[0].mxu0
        %v1695 = vadd.f32 %v1652, %v1694
        %1696 = vdwg.mxu0
        %1697 = vmatprep.subr.bf16.mxu0 %v1365
        %1698 = vmatpush1.bf16.msra.mxu0 %v1364
        %1699 = vmatprep.subr.bf16.mxu0 0
        %1700 = vmatpush1.bf16.msra.mxu0 0
        %1701 = vmatprep.subr.bf16.mxu0 0
        %1702 = vmatpush1.bf16.msra.mxu0 0
        %1703 = vmatprep.subr.bf16.mxu0 0
        %1704 = vmatpush1.bf16.msra.mxu0 0
        %1705 = vmatprep.subr.bf16.mxu0 0
        %1706 = vmatpush1.bf16.msra.mxu0 0
        %1707 = vmatprep.subr.bf16.mxu0 0
        %1708 = vmatpush1.bf16.msra.mxu0 0
        %1709 = vmatprep.subr.bf16.mxu0 0
        %1710 = vmatpush1.bf16.msra.mxu0 0
        %1711 = vmatprep.subr.bf16.mxu0 0
        %1712 = vmatpush1.bf16.msra.mxu0 0
        %1713 = vmatprep.subr.bf16.mxu0 0
        %1714 = vmatpush1.bf16.msra.mxu0 0
        %1715 = vmatprep.subr.bf16.mxu0 0
        %1716 = vmatpush1.bf16.msra.mxu0 0
        %1717 = vmatprep.subr.bf16.mxu0 0
        %1718 = vmatpush1.bf16.msra.mxu0 0
        %1719 = vmatprep.subr.bf16.mxu0 0
        %1720 = vmatpush1.bf16.msra.mxu0 0
        %1721 = vmatprep.subr.bf16.mxu0 0
        %1722 = vmatpush1.bf16.msra.mxu0 0
        %1723 = vmatprep.subr.bf16.mxu0 0
        %1724 = vmatpush1.bf16.msra.mxu0 0
        %1725 = vmatprep.subr.bf16.mxu0 0
        %1726 = vmatpush1.bf16.msra.mxu0 0
        %1727 = vmatprep.subr.bf16.mxu0 0
        %1728 = vmatpush1.bf16.msra.mxu0 0
        %1729 = vmatprep.mubr.bf16.mxu0 0
        %1730 = vmatmul.mubr.bf16.gmra.mrb[0].mxu0 %v1566
        %v1731 = vpop.f32.mrb[0].mxu0
        %v1732 = vadd.f32 %v1689, %v1731
        %v1733 = vpop.f32.mrb[0].mxu0
        %v1734 = vadd.f32 %v1691, %v1733
        %v1735 = vpop.f32.mrb[0].mxu0
        %v1736 = vadd.f32 %v1693, %v1735
        %v1737 = vpop.f32.mrb[0].mxu0
        %v1738 = vadd.f32 %v1695, %v1737
        %1739 = vdwg.mxu0
        %1740 = vmatprep.subr.bf16.mxu0 %v1175
        %1741 = vmatpush1.bf16.msra.mxu0 %v1174
        %1742 = vmatprep.subr.bf16.mxu0 %v1179
        %1743 = vmatpush1.bf16.msra.mxu0 %v1178
        %1744 = vmatprep.subr.bf16.mxu0 %v1183
        %1745 = vmatpush1.bf16.msra.mxu0 %v1182
        %1746 = vmatprep.subr.bf16.mxu0 %v1187
        %1747 = vmatpush1.bf16.msra.mxu0 %v1186
        %1748 = vmatprep.subr.bf16.mxu0 %v1191
        %1749 = vmatpush1.bf16.msra.mxu0 %v1190
        %1750 = vmatprep.subr.bf16.mxu0 %v1195
        %1751 = vmatpush1.bf16.msra.mxu0 %v1194
        %1752 = vmatprep.subr.bf16.mxu0 %v1199
        %1753 = vmatpush1.bf16.msra.mxu0 %v1198
        %1754 = vmatprep.subr.bf16.mxu0 %v1203
        %1755 = vmatpush1.bf16.msra.mxu0 %v1202
        %1756 = vmatprep.subr.bf16.mxu0 %v1207
        %1757 = vmatpush1.bf16.msra.mxu0 %v1206
        %1758 = vmatprep.subr.bf16.mxu0 %v1211
        %1759 = vmatpush1.bf16.msra.mxu0 %v1210
        %1760 = vmatprep.subr.bf16.mxu0 %v1215
        %1761 = vmatpush1.bf16.msra.mxu0 %v1214
        %1762 = vmatprep.subr.bf16.mxu0 %v1219
        %1763 = vmatpush1.bf16.msra.mxu0 %v1218
        %1764 = vmatprep.subr.bf16.mxu0 %v1223
        %1765 = vmatpush1.bf16.msra.mxu0 %v1222
        %1766 = vmatprep.subr.bf16.mxu0 %v1227
        %1767 = vmatpush1.bf16.msra.mxu0 %v1226
        %1768 = vmatprep.subr.bf16.mxu0 %v1231
        %1769 = vmatpush1.bf16.msra.mxu0 %v1230
        %1770 = vmatprep.subr.bf16.mxu0 %v1235
        %1771 = vmatpush1.bf16.msra.mxu0 %v1234
        %1772 = vmatprep.mubr.bf16.mxu0 %v360
        %1773 = vmatmul.mubr.bf16.gmra.mrb[0].mxu0 %v359
        %v1774 = vpop.f32.mrb[0].mxu0
        %v1775 = vadd.f32 %v575, %v1774
        %v1776 = vpop.f32.mrb[0].mxu0
        %v1777 = vadd.f32 %v579, %v1776
        %v1778 = vpop.f32.mrb[0].mxu0
        %v1779 = vadd.f32 %v575, %v1778
        %v1780 = vpop.f32.mrb[0].mxu0
        %v1781 = vadd.f32 %v579, %v1780
        %1782 = vdwg.mxu0
        %1783 = vmatprep.subr.bf16.mxu0 %v1239
        %1784 = vmatpush1.bf16.msra.mxu0 %v1238
        %1785 = vmatprep.subr.bf16.mxu0 %v1243
        %1786 = vmatpush1.bf16.msra.mxu0 %v1242
        %1787 = vmatprep.subr.bf16.mxu0 %v1247
        %1788 = vmatpush1.bf16.msra.mxu0 %v1246
        %1789 = vmatprep.subr.bf16.mxu0 %v1251
        %1790 = vmatpush1.bf16.msra.mxu0 %v1250
        %1791 = vmatprep.subr.bf16.mxu0 %v1255
        %1792 = vmatpush1.bf16.msra.mxu0 %v1254
        %1793 = vmatprep.subr.bf16.mxu0 %v1259
        %1794 = vmatpush1.bf16.msra.mxu0 %v1258
        %1795 = vmatprep.subr.bf16.mxu0 %v1263
        %1796 = vmatpush1.bf16.msra.mxu0 %v1262
        %1797 = vmatprep.subr.bf16.mxu0 %v1267
        %1798 = vmatpush1.bf16.msra.mxu0 %v1266
        %1799 = vmatprep.subr.bf16.mxu0 %v1271
        %1800 = vmatpush1.bf16.msra.mxu0 %v1270
        %1801 = vmatprep.subr.bf16.mxu0 %v1275
        %1802 = vmatpush1.bf16.msra.mxu0 %v1274
        %1803 = vmatprep.subr.bf16.mxu0 %v1279
        %1804 = vmatpush1.bf16.msra.mxu0 %v1278
        %1805 = vmatprep.subr.bf16.mxu0 %v1283
        %1806 = vmatpush1.bf16.msra.mxu0 %v1282
        %1807 = vmatprep.subr.bf16.mxu0 %v1287
        %1808 = vmatpush1.bf16.msra.mxu0 %v1286
        %1809 = vmatprep.subr.bf16.mxu0 %v1291
        %1810 = vmatpush1.bf16.msra.mxu0 %v1290
        %1811 = vmatprep.subr.bf16.mxu0 %v1295
        %1812 = vmatpush1.bf16.msra.mxu0 %v1294
        %1813 = vmatprep.subr.bf16.mxu0 %v1299
        %1814 = vmatpush1.bf16.msra.mxu0 %v1298
        %1815 = vmatprep.mubr.bf16.mxu0 %v362
        %1816 = vmatmul.mubr.bf16.gmra.mrb[0].mxu0 %v361
        %v1817 = vpop.f32.mrb[0].mxu0
        %v1818 = vadd.f32 %v1775, %v1817
        %v1819 = vpop.f32.mrb[0].mxu0
        %v1820 = vadd.f32 %v1777, %v1819
        %v1821 = vpop.f32.mrb[0].mxu0
        %v1822 = vadd.f32 %v1779, %v1821
        %v1823 = vpop.f32.mrb[0].mxu0
        %v1824 = vadd.f32 %v1781, %v1823
        %1825 = vdwg.mxu0
        %1826 = vmatprep.subr.bf16.mxu0 %v1303
        %1827 = vmatpush1.bf16.msra.mxu0 %v1302
        %1828 = vmatprep.subr.bf16.mxu0 %v1307
        %1829 = vmatpush1.bf16.msra.mxu0 %v1306
        %1830 = vmatprep.subr.bf16.mxu0 %v1311
        %1831 = vmatpush1.bf16.msra.mxu0 %v1310
        %1832 = vmatprep.subr.bf16.mxu0 %v1315
        %1833 = vmatpush1.bf16.msra.mxu0 %v1314
        %1834 = vmatprep.subr.bf16.mxu0 %v1319
        %1835 = vmatpush1.bf16.msra.mxu0 %v1318
        %1836 = vmatprep.subr.bf16.mxu0 %v1323
        %1837 = vmatpush1.bf16.msra.mxu0 %v1322
        %1838 = vmatprep.subr.bf16.mxu0 %v1327
        %1839 = vmatpush1.bf16.msra.mxu0 %v1326
        %1840 = vmatprep.subr.bf16.mxu0 %v1331
        %1841 = vmatpush1.bf16.msra.mxu0 %v1330
        %1842 = vmatprep.subr.bf16.mxu0 %v1335
        %1843 = vmatpush1.bf16.msra.mxu0 %v1334
        %1844 = vmatprep.subr.bf16.mxu0 %v1339
        %1845 = vmatpush1.bf16.msra.mxu0 %v1338
        %1846 = vmatprep.subr.bf16.mxu0 %v1343
        %1847 = vmatpush1.bf16.msra.mxu0 %v1342
        %1848 = vmatprep.subr.bf16.mxu0 %v1347
        %1849 = vmatpush1.bf16.msra.mxu0 %v1346
        %1850 = vmatprep.subr.bf16.mxu0 %v1351
        %1851 = vmatpush1.bf16.msra.mxu0 %v1350
        %1852 = vmatprep.subr.bf16.mxu0 %v1355
        %1853 = vmatpush1.bf16.msra.mxu0 %v1354
        %1854 = vmatprep.subr.bf16.mxu0 %v1359
        %1855 = vmatpush1.bf16.msra.mxu0 %v1358
        %1856 = vmatprep.subr.bf16.mxu0 %v1363
        %1857 = vmatpush1.bf16.msra.mxu0 %v1362
        %1858 = vmatprep.mubr.bf16.mxu0 %v364
        %1859 = vmatmul.mubr.bf16.gmra.mrb[0].mxu0 %v363
        %v1860 = vpop.f32.mrb[0].mxu0
        %v1861 = vadd.f32 %v1818, %v1860
        %v1862 = vpop.f32.mrb[0].mxu0
        %v1863 = vadd.f32 %v1820, %v1862
        %v1864 = vpop.f32.mrb[0].mxu0
        %v1865 = vadd.f32 %v1822, %v1864
        %v1866 = vpop.f32.mrb[0].mxu0
        %v1867 = vadd.f32 %v1824, %v1866
        %1868 = vdwg.mxu0
        %1869 = vmatprep.subr.bf16.mxu0 %v1367
        %1870 = vmatpush1.bf16.msra.mxu0 %v1366
        %1871 = vmatprep.subr.bf16.mxu0 0
        %1872 = vmatpush1.bf16.msra.mxu0 0
        %1873 = vmatprep.subr.bf16.mxu0 0
        %1874 = vmatpush1.bf16.msra.mxu0 0
        %1875 = vmatprep.subr.bf16.mxu0 0
        %1876 = vmatpush1.bf16.msra.mxu0 0
        %1877 = vmatprep.subr.bf16.mxu0 0
        %1878 = vmatpush1.bf16.msra.mxu0 0
        %1879 = vmatprep.subr.bf16.mxu0 0
        %1880 = vmatpush1.bf16.msra.mxu0 0
        %1881 = vmatprep.subr.bf16.mxu0 0
        %1882 = vmatpush1.bf16.msra.mxu0 0
        %1883 = vmatprep.subr.bf16.mxu0 0
        %1884 = vmatpush1.bf16.msra.mxu0 0
        %1885 = vmatprep.subr.bf16.mxu0 0
        %1886 = vmatpush1.bf16.msra.mxu0 0
        %1887 = vmatprep.subr.bf16.mxu0 0
        %1888 = vmatpush1.bf16.msra.mxu0 0
        %1889 = vmatprep.subr.bf16.mxu0 0
        %1890 = vmatpush1.bf16.msra.mxu0 0
        %1891 = vmatprep.subr.bf16.mxu0 0
        %1892 = vmatpush1.bf16.msra.mxu0 0
        %1893 = vmatprep.subr.bf16.mxu0 0
        %1894 = vmatpush1.bf16.msra.mxu0 0
        %1895 = vmatprep.subr.bf16.mxu0 0
        %1896 = vmatpush1.bf16.msra.mxu0 0
        %1897 = vmatprep.subr.bf16.mxu0 0
        %1898 = vmatpush1.bf16.msra.mxu0 0
        %1899 = vmatprep.subr.bf16.mxu0 0
        %1900 = vmatpush1.bf16.msra.mxu0 0
        %1901 = vmatprep.mubr.bf16.mxu0 0
        %1902 = vmatmul.mubr.bf16.gmra.mrb[0].mxu0 %v1566
        %v1903 = vpop.f32.mrb[0].mxu0
        %v1904 = vadd.f32 %v1861, %v1903
        %v1905 = vpop.f32.mrb[0].mxu0
        %v1906 = vadd.f32 %v1863, %v1905
        %v1907 = vpop.f32.mrb[0].mxu0
        %v1908 = vadd.f32 %v1865, %v1907
        %v1909 = vpop.f32.mrb[0].mxu0
        %v1910 = vadd.f32 %v1867, %v1909
        %1911 = vdwg.mxu0
        %v1912 = vmax.f32 %v1732, 0.0
        %v1913 = vmax.f32 %v1734, 0.0
        %v1914 = vmax.f32 %v1904, 0.0
        %v1915 = vmax.f32 %v1906, 0.0
        %v1916 = vmax.f32 %v1736, 0.0
        %v1917 = vmax.f32 %v1738, 0.0
        %v1918 = vmax.f32 %v1908, 0.0
        %v1919 = vmax.f32 %v1910, 0.0
        %v1920 = vpack.c.bf16 %v1916, %v1912
        %v1921 = vpack.c.bf16 %v1917, %v1913
        %v1922 = vpack.c.bf16 %v1918, %v1914
        %v1923 = vpack.c.bf16 %v1919, %v1915
        %v1924 = vld [vmem:[#allocation7] sm:$0xff]
        %v1925 = vld [vmem:[#allocation7 + $0x8] sm:$0xff]
        %v1926 = vld [vmem:[#allocation7 + $0x10] sm:$0xff]
        %v1927 = vld [vmem:[#allocation7 + $0x18] sm:$0xff]
        %v1928 = vld [vmem:[#allocation7 + $0x20] sm:$0xff]
        %v1929 = vld [vmem:[#allocation7 + $0x28] sm:$0xff]
        %v1930 = vld [vmem:[#allocation7 + $0x30] sm:$0xff]
        %v1931 = vld [vmem:[#allocation7 + $0x38] sm:$0xff]
        %v1932 = vld [vmem:[#allocation7 + $0x40] sm:$0xff]
        %v1933 = vld [vmem:[#allocation7 + $0x48] sm:$0xff]
        %v1934 = vld [vmem:[#allocation7 + $0x50] sm:$0xff]
        %v1935 = vld [vmem:[#allocation7 + $0x58] sm:$0xff]
        %v1936 = vld [vmem:[#allocation7 + $0x60] sm:$0xff]
        %v1937 = vld [vmem:[#allocation7 + $0x68] sm:$0xff]
        %v1938 = vld [vmem:[#allocation7 + $0x70] sm:$0xff]
        %v1939 = vld [vmem:[#allocation7 + $0x78] sm:$0xff]
        %v1940 = vld [vmem:[#allocation7 + $0x80] sm:$0xff]
        %v1941 = vld [vmem:[#allocation7 + $0x88] sm:$0xff]
        %v1942 = vld [vmem:[#allocation7 + $0x90] sm:$0xff]
        %v1943 = vld [vmem:[#allocation7 + $0x98] sm:$0xff]
        %v1944 = vld [vmem:[#allocation7 + $0xa0] sm:$0xff]
        %v1945 = vld [vmem:[#allocation7 + $0xa8] sm:$0xff]
        %v1946 = vld [vmem:[#allocation7 + $0xb0] sm:$0xff]
        %v1947 = vld [vmem:[#allocation7 + $0xb8] sm:$0xff]
        %v1948 = vld [vmem:[#allocation7 + $0xc0] sm:$0xff]
        %v1949 = vld [vmem:[#allocation7 + $0xc8] sm:$0xff]
        %v1950 = vld [vmem:[#allocation7 + $0xd0] sm:$0xff]
        %v1951 = vld [vmem:[#allocation7 + $0xd8] sm:$0xff]
        %v1952 = vld [vmem:[#allocation7 + $0xe0] sm:$0xff]
        %v1953 = vld [vmem:[#allocation7 + $0xe8] sm:$0xff]
        %v1954 = vld [vmem:[#allocation7 + $0xf0] sm:$0xff]
        %v1955 = vld [vmem:[#allocation7 + $0xf8] sm:$0xff]
        %v1956 = vld [vmem:[#allocation7 + $0x100] sm:$0xff]
        %v1957 = vld [vmem:[#allocation7 + $0x108] sm:$0xff]
        %v1958 = vld [vmem:[#allocation7 + $0x110] sm:$0xff]
        %v1959 = vld [vmem:[#allocation7 + $0x118] sm:$0xff]
        %v1960 = vld [vmem:[#allocation7 + $0x120] sm:$0xff]
        %v1961 = vld [vmem:[#allocation7 + $0x128] sm:$0xff]
        %v1962 = vld [vmem:[#allocation7 + $0x130] sm:$0xff]
        %v1963 = vld [vmem:[#allocation7 + $0x138] sm:$0xff]
        %v1964 = vld [vmem:[#allocation7 + $0x140] sm:$0xff]
        %v1965 = vld [vmem:[#allocation7 + $0x148] sm:$0xff]
        %v1966 = vld [vmem:[#allocation7 + $0x150] sm:$0xff]
        %v1967 = vld [vmem:[#allocation7 + $0x158] sm:$0xff]
        %v1968 = vld [vmem:[#allocation7 + $0x160] sm:$0xff]
        %v1969 = vld [vmem:[#allocation7 + $0x168] sm:$0xff]
        %v1970 = vld [vmem:[#allocation7 + $0x170] sm:$0xff]
        %v1971 = vld [vmem:[#allocation7 + $0x178] sm:$0xff]
        %v1972 = vld [vmem:[#allocation7 + $0x180] sm:$0xff]
        %v1973 = vld [vmem:[#allocation7 + $0x188] sm:$0xff]
        %v1974 = vld [vmem:[#allocation7 + $0x190] sm:$0xff]
        %v1975 = vld [vmem:[#allocation7 + $0x198] sm:$0xff]
        %v1976 = vld [vmem:[#allocation7 + $0x1a0] sm:$0xff]
        %v1977 = vld [vmem:[#allocation7 + $0x1a8] sm:$0xff]
        %v1978 = vld [vmem:[#allocation7 + $0x1b0] sm:$0xff]
        %v1979 = vld [vmem:[#allocation7 + $0x1b8] sm:$0xff]
        %v1980 = vld [vmem:[#allocation7 + $0x1c0] sm:$0xff]
        %v1981 = vld [vmem:[#allocation7 + $0x1c8] sm:$0xff]
        %v1982 = vld [vmem:[#allocation7 + $0x1d0] sm:$0xff]
        %v1983 = vld [vmem:[#allocation7 + $0x1d8] sm:$0xff]
        %v1984 = vld [vmem:[#allocation7 + $0x1e0] sm:$0xff]
        %v1985 = vld [vmem:[#allocation7 + $0x1e8] sm:$0xff]
        %v1986 = vld [vmem:[#allocation7 + $0x1f0] sm:$0xff]
        %v1987 = vld [vmem:[#allocation7 + $0x1f8] sm:$0xff]
        %v1988 = vld [vmem:[%s4] sm:$0x3]
        %v1990 = vlaneseq
        %v1991 = vshrl.u32 %v1990, 7
        %v1992 = vsub.s32 0, %v1991
        %v1993 = vrot.slane %v1988, %v1992
        %v1994 = vlaneseq
        %v1995 = vshrl.u32 %v1994, 7
        %v1996 = vsub.s32 1, %v1995
        %v1997 = vrot.slane %v1988, %v1996
        %v2064 = vunpack.c.l.b16 %v1924
        %v2065 = vunpack.c.h.b16 %v1924
        %v2066 = vunpack.c.l.b16 %v1925
        %v2067 = vunpack.c.h.b16 %v1925
        %v2068 = vunpack.c.l.b16 %v1926
        %v2069 = vunpack.c.h.b16 %v1926
        %v2070 = vunpack.c.l.b16 %v1927
        %v2071 = vunpack.c.h.b16 %v1927
        %v2072 = vunpack.c.l.b16 %v1928
        %v2073 = vunpack.c.h.b16 %v1928
        %v2074 = vunpack.c.l.b16 %v1929
        %v2075 = vunpack.c.h.b16 %v1929
        %v2076 = vunpack.c.l.b16 %v1930
        %v2077 = vunpack.c.h.b16 %v1930
        %v2078 = vunpack.c.l.b16 %v1931
        %v2079 = vunpack.c.h.b16 %v1931
        %v2080 = vunpack.c.l.b16 %v1932
        %v2081 = vunpack.c.h.b16 %v1932
        %v2082 = vunpack.c.l.b16 %v1933
        %v2083 = vunpack.c.h.b16 %v1933
        %v2084 = vunpack.c.l.b16 %v1934
        %v2085 = vunpack.c.h.b16 %v1934
        %v2086 = vunpack.c.l.b16 %v1935
        %v2087 = vunpack.c.h.b16 %v1935
        %v2088 = vunpack.c.l.b16 %v1936
        %v2089 = vunpack.c.h.b16 %v1936
        %v2090 = vunpack.c.l.b16 %v1937
        %v2091 = vunpack.c.h.b16 %v1937
        %v2092 = vunpack.c.l.b16 %v1938
        %v2093 = vunpack.c.h.b16 %v1938
        %v2094 = vunpack.c.l.b16 %v1939
        %v2095 = vunpack.c.h.b16 %v1939
        %v2096 = vunpack.c.l.b16 %v1940
        %v2097 = vunpack.c.h.b16 %v1940
        %v2098 = vunpack.c.l.b16 %v1941
        %v2099 = vunpack.c.h.b16 %v1941
        %v2100 = vunpack.c.l.b16 %v1942
        %v2101 = vunpack.c.h.b16 %v1942
        %v2102 = vunpack.c.l.b16 %v1943
        %v2103 = vunpack.c.h.b16 %v1943
        %v2104 = vunpack.c.l.b16 %v1944
        %v2105 = vunpack.c.h.b16 %v1944
        %v2106 = vunpack.c.l.b16 %v1945
        %v2107 = vunpack.c.h.b16 %v1945
        %v2108 = vunpack.c.l.b16 %v1946
        %v2109 = vunpack.c.h.b16 %v1946
        %v2110 = vunpack.c.l.b16 %v1947
        %v2111 = vunpack.c.h.b16 %v1947
        %v2112 = vunpack.c.l.b16 %v1948
        %v2113 = vunpack.c.h.b16 %v1948
        %v2114 = vunpack.c.l.b16 %v1949
        %v2115 = vunpack.c.h.b16 %v1949
        %v2116 = vunpack.c.l.b16 %v1950
        %v2117 = vunpack.c.h.b16 %v1950
        %v2118 = vunpack.c.l.b16 %v1951
        %v2119 = vunpack.c.h.b16 %v1951
        %v2120 = vunpack.c.l.b16 %v1952
        %v2121 = vunpack.c.h.b16 %v1952
        %v2122 = vunpack.c.l.b16 %v1953
        %v2123 = vunpack.c.h.b16 %v1953
        %v2124 = vunpack.c.l.b16 %v1954
        %v2125 = vunpack.c.h.b16 %v1954
        %v2126 = vunpack.c.l.b16 %v1955
        %v2127 = vunpack.c.h.b16 %v1955
        %v2128 = vunpack.c.l.b16 %v1956
        %v2129 = vunpack.c.h.b16 %v1956
        %v2130 = vunpack.c.l.b16 %v1957
        %v2131 = vunpack.c.h.b16 %v1957
        %v2132 = vunpack.c.l.b16 %v1958
        %v2133 = vunpack.c.h.b16 %v1958
        %v2134 = vunpack.c.l.b16 %v1959
        %v2135 = vunpack.c.h.b16 %v1959
        %v2136 = vunpack.c.l.b16 %v1960
        %v2137 = vunpack.c.h.b16 %v1960
        %v2138 = vunpack.c.l.b16 %v1961
        %v2139 = vunpack.c.h.b16 %v1961
        %v2140 = vunpack.c.l.b16 %v1962
        %v2141 = vunpack.c.h.b16 %v1962
        %v2142 = vunpack.c.l.b16 %v1963
        %v2143 = vunpack.c.h.b16 %v1963
        %v2144 = vunpack.c.l.b16 %v1964
        %v2145 = vunpack.c.h.b16 %v1964
        %v2146 = vunpack.c.l.b16 %v1965
        %v2147 = vunpack.c.h.b16 %v1965
        %v2148 = vunpack.c.l.b16 %v1966
        %v2149 = vunpack.c.h.b16 %v1966
        %v2150 = vunpack.c.l.b16 %v1967
        %v2151 = vunpack.c.h.b16 %v1967
        %v2152 = vunpack.c.l.b16 %v1968
        %v2153 = vunpack.c.h.b16 %v1968
        %v2154 = vunpack.c.l.b16 %v1969
        %v2155 = vunpack.c.h.b16 %v1969
        %v2156 = vunpack.c.l.b16 %v1970
        %v2157 = vunpack.c.h.b16 %v1970
        %v2158 = vunpack.c.l.b16 %v1971
        %v2159 = vunpack.c.h.b16 %v1971
        %v2160 = vunpack.c.l.b16 %v1972
        %v2161 = vunpack.c.h.b16 %v1972
        %v2162 = vunpack.c.l.b16 %v1973
        %v2163 = vunpack.c.h.b16 %v1973
        %v2164 = vunpack.c.l.b16 %v1974
        %v2165 = vunpack.c.h.b16 %v1974
        %v2166 = vunpack.c.l.b16 %v1975
        %v2167 = vunpack.c.h.b16 %v1975
        %v2168 = vunpack.c.l.b16 %v1976
        %v2169 = vunpack.c.h.b16 %v1976
        %v2170 = vunpack.c.l.b16 %v1977
        %v2171 = vunpack.c.h.b16 %v1977
        %v2172 = vunpack.c.l.b16 %v1978
        %v2173 = vunpack.c.h.b16 %v1978
        %v2174 = vunpack.c.l.b16 %v1979
        %v2175 = vunpack.c.h.b16 %v1979
        %v2176 = vunpack.c.l.b16 %v1980
        %v2177 = vunpack.c.h.b16 %v1980
        %v2178 = vunpack.c.l.b16 %v1981
        %v2179 = vunpack.c.h.b16 %v1981
        %v2180 = vunpack.c.l.b16 %v1982
        %v2181 = vunpack.c.h.b16 %v1982
        %v2182 = vunpack.c.l.b16 %v1983
        %v2183 = vunpack.c.h.b16 %v1983
        %v2184 = vunpack.c.l.b16 %v1984
        %v2185 = vunpack.c.h.b16 %v1984
        %v2186 = vunpack.c.l.b16 %v1985
        %v2187 = vunpack.c.h.b16 %v1985
        %v2188 = vunpack.c.l.b16 %v1986
        %v2189 = vunpack.c.h.b16 %v1986
        %v2190 = vunpack.c.l.b16 %v1987
        %v2191 = vunpack.c.h.b16 %v1987
        %v2192 = vpack.c.b16 %v2066, %v2064
        %v2193 = vpack.c.b16 %v2067, %v2065
        %v2194 = vpack.c.b16 %v2070, %v2068
        %v2195 = vpack.c.b16 %v2071, %v2069
        %v2196 = vpack.c.b16 %v2074, %v2072
        %v2197 = vpack.c.b16 %v2075, %v2073
        %v2198 = vpack.c.b16 %v2078, %v2076
        %v2199 = vpack.c.b16 %v2079, %v2077
        %v2200 = vpack.c.b16 %v2082, %v2080
        %v2201 = vpack.c.b16 %v2083, %v2081
        %v2202 = vpack.c.b16 %v2086, %v2084
        %v2203 = vpack.c.b16 %v2087, %v2085
        %v2204 = vpack.c.b16 %v2090, %v2088
        %v2205 = vpack.c.b16 %v2091, %v2089
        %v2206 = vpack.c.b16 %v2094, %v2092
        %v2207 = vpack.c.b16 %v2095, %v2093
        %v2208 = vpack.c.b16 %v2098, %v2096
        %v2209 = vpack.c.b16 %v2099, %v2097
        %v2210 = vpack.c.b16 %v2102, %v2100
        %v2211 = vpack.c.b16 %v2103, %v2101
        %v2212 = vpack.c.b16 %v2106, %v2104
        %v2213 = vpack.c.b16 %v2107, %v2105
        %v2214 = vpack.c.b16 %v2110, %v2108
        %v2215 = vpack.c.b16 %v2111, %v2109
        %v2216 = vpack.c.b16 %v2114, %v2112
        %v2217 = vpack.c.b16 %v2115, %v2113
        %v2218 = vpack.c.b16 %v2118, %v2116
        %v2219 = vpack.c.b16 %v2119, %v2117
        %v2220 = vpack.c.b16 %v2122, %v2120
        %v2221 = vpack.c.b16 %v2123, %v2121
        %v2222 = vpack.c.b16 %v2126, %v2124
        %v2223 = vpack.c.b16 %v2127, %v2125
        %v2224 = vpack.c.b16 %v2130, %v2128
        %v2225 = vpack.c.b16 %v2131, %v2129
        %v2226 = vpack.c.b16 %v2134, %v2132
        %v2227 = vpack.c.b16 %v2135, %v2133
        %v2228 = vpack.c.b16 %v2138, %v2136
        %v2229 = vpack.c.b16 %v2139, %v2137
        %v2230 = vpack.c.b16 %v2142, %v2140
        %v2231 = vpack.c.b16 %v2143, %v2141
        %v2232 = vpack.c.b16 %v2146, %v2144
        %v2233 = vpack.c.b16 %v2147, %v2145
        %v2234 = vpack.c.b16 %v2150, %v2148
        %v2235 = vpack.c.b16 %v2151, %v2149
        %v2236 = vpack.c.b16 %v2154, %v2152
        %v2237 = vpack.c.b16 %v2155, %v2153
        %v2238 = vpack.c.b16 %v2158, %v2156
        %v2239 = vpack.c.b16 %v2159, %v2157
        %v2240 = vpack.c.b16 %v2162, %v2160
        %v2241 = vpack.c.b16 %v2163, %v2161
        %v2242 = vpack.c.b16 %v2166, %v2164
        %v2243 = vpack.c.b16 %v2167, %v2165
        %v2244 = vpack.c.b16 %v2170, %v2168
        %v2245 = vpack.c.b16 %v2171, %v2169
        %v2246 = vpack.c.b16 %v2174, %v2172
        %v2247 = vpack.c.b16 %v2175, %v2173
        %v2248 = vpack.c.b16 %v2178, %v2176
        %v2249 = vpack.c.b16 %v2179, %v2177
        %v2250 = vpack.c.b16 %v2182, %v2180
        %v2251 = vpack.c.b16 %v2183, %v2181
        %v2252 = vpack.c.b16 %v2186, %v2184
        %v2253 = vpack.c.b16 %v2187, %v2185
        %v2254 = vpack.c.b16 %v2190, %v2188
        %v2255 = vpack.c.b16 %v2191, %v2189
        %2320 = vmatprep.subr.bf16.mxu0 %v2193
        %2321 = vmatpush1.bf16.msra.mxu0 %v2192
        %2322 = vmatprep.subr.bf16.mxu0 %v2195
        %2323 = vmatpush1.bf16.msra.mxu0 %v2194
        %2324 = vmatprep.subr.bf16.mxu0 %v2197
        %2325 = vmatpush1.bf16.msra.mxu0 %v2196
        %2326 = vmatprep.subr.bf16.mxu0 %v2199
        %2327 = vmatpush1.bf16.msra.mxu0 %v2198
        %2328 = vmatprep.subr.bf16.mxu0 %v2201
        %2329 = vmatpush1.bf16.msra.mxu0 %v2200
        %2330 = vmatprep.subr.bf16.mxu0 %v2203
        %2331 = vmatpush1.bf16.msra.mxu0 %v2202
        %2332 = vmatprep.subr.bf16.mxu0 %v2205
        %2333 = vmatpush1.bf16.msra.mxu0 %v2204
        %2334 = vmatprep.subr.bf16.mxu0 %v2207
        %2335 = vmatpush1.bf16.msra.mxu0 %v2206
        %2336 = vmatprep.subr.bf16.mxu0 %v2209
        %2337 = vmatpush1.bf16.msra.mxu0 %v2208
        %2338 = vmatprep.subr.bf16.mxu0 %v2211
        %2339 = vmatpush1.bf16.msra.mxu0 %v2210
        %2340 = vmatprep.subr.bf16.mxu0 %v2213
        %2341 = vmatpush1.bf16.msra.mxu0 %v2212
        %2342 = vmatprep.subr.bf16.mxu0 %v2215
        %2343 = vmatpush1.bf16.msra.mxu0 %v2214
        %2344 = vmatprep.subr.bf16.mxu0 %v2217
        %2345 = vmatpush1.bf16.msra.mxu0 %v2216
        %2346 = vmatprep.subr.bf16.mxu0 %v2219
        %2347 = vmatpush1.bf16.msra.mxu0 %v2218
        %2348 = vmatprep.subr.bf16.mxu0 %v2221
        %2349 = vmatpush1.bf16.msra.mxu0 %v2220
        %2350 = vmatprep.subr.bf16.mxu0 %v2223
        %2351 = vmatpush1.bf16.msra.mxu0 %v2222
        %2352 = vmatprep.mubr.bf16.mxu0 %v1921
        %2353 = vmatmul.mubr.bf16.gmra.mrb[0].mxu0 %v1920
        %v2354 = vpop.f32.mrb[0].mxu0
        %v2355 = vadd.f32 %v1993, %v2354
        %v2356 = vpop.f32.mrb[0].mxu0
        %v2357 = vadd.f32 %v1997, %v2356
        %v2358 = vpop.f32.mrb[0].mxu0
        %v2359 = vadd.f32 %v1993, %v2358
        %v2360 = vpop.f32.mrb[0].mxu0
        %v2361 = vadd.f32 %v1997, %v2360
        %2362 = vdwg.mxu0
        %2363 = vmatprep.subr.bf16.mxu0 %v2225
        %2364 = vmatpush1.bf16.msra.mxu0 %v2224
        %2365 = vmatprep.subr.bf16.mxu0 %v2227
        %2366 = vmatpush1.bf16.msra.mxu0 %v2226
        %2367 = vmatprep.subr.bf16.mxu0 %v2229
        %2368 = vmatpush1.bf16.msra.mxu0 %v2228
        %2369 = vmatprep.subr.bf16.mxu0 %v2231
        %2370 = vmatpush1.bf16.msra.mxu0 %v2230
        %2371 = vmatprep.subr.bf16.mxu0 %v2233
        %2372 = vmatpush1.bf16.msra.mxu0 %v2232
        %2373 = vmatprep.subr.bf16.mxu0 %v2235
        %2374 = vmatpush1.bf16.msra.mxu0 %v2234
        %2375 = vmatprep.subr.bf16.mxu0 %v2237
        %2376 = vmatpush1.bf16.msra.mxu0 %v2236
        %2377 = vmatprep.subr.bf16.mxu0 %v2239
        %2378 = vmatpush1.bf16.msra.mxu0 %v2238
        %2379 = vmatprep.subr.bf16.mxu0 %v2241
        %2380 = vmatpush1.bf16.msra.mxu0 %v2240
        %2381 = vmatprep.subr.bf16.mxu0 %v2243
        %2382 = vmatpush1.bf16.msra.mxu0 %v2242
        %2383 = vmatprep.subr.bf16.mxu0 %v2245
        %2384 = vmatpush1.bf16.msra.mxu0 %v2244
        %2385 = vmatprep.subr.bf16.mxu0 %v2247
        %2386 = vmatpush1.bf16.msra.mxu0 %v2246
        %2387 = vmatprep.subr.bf16.mxu0 %v2249
        %2388 = vmatpush1.bf16.msra.mxu0 %v2248
        %2389 = vmatprep.subr.bf16.mxu0 %v2251
        %2390 = vmatpush1.bf16.msra.mxu0 %v2250
        %2391 = vmatprep.subr.bf16.mxu0 %v2253
        %2392 = vmatpush1.bf16.msra.mxu0 %v2252
        %2393 = vmatprep.subr.bf16.mxu0 %v2255
        %2394 = vmatpush1.bf16.msra.mxu0 %v2254
        %2395 = vmatprep.mubr.bf16.mxu0 %v1923
        %2396 = vmatmul.mubr.bf16.gmra.mrb[0].mxu0 %v1922
        %v2397 = vpop.f32.mrb[0].mxu0
        %v2398 = vadd.f32 %v2355, %v2397
        %v2399 = vpop.f32.mrb[0].mxu0
        %v2400 = vadd.f32 %v2357, %v2399
        %v2401 = vpop.f32.mrb[0].mxu0
        %v2402 = vadd.f32 %v2359, %v2401
        %v2403 = vpop.f32.mrb[0].mxu0
        %v2404 = vadd.f32 %v2361, %v2403
        %2405 = vdwg.mxu0
        %v2406 = vmax.f32 %v2398, 0.0
        %v2407 = vmax.f32 %v2400, 0.0
        %v2408 = vmax.f32 %v2402, 0.0
        %v2409 = vmax.f32 %v2404, 0.0
        %v2410 = vpack.c.bf16 %v2408, %v2406
        %v2411 = vpack.c.bf16 %v2409, %v2407
        %v2412 = vld [vmem:[#allocation8] sm:$0xf]
        %v2413 = vld [vmem:[#allocation8 + $0x4] sm:$0xf]
        %v2414 = vld [vmem:[#allocation8 + $0x8] sm:$0xf]
        %v2415 = vld [vmem:[#allocation8 + $0xc] sm:$0xf]
        %v2416 = vld [vmem:[#allocation8 + $0x10] sm:$0xf]
        %v2417 = vld [vmem:[#allocation8 + $0x14] sm:$0xf]
        %v2418 = vld [vmem:[#allocation8 + $0x18] sm:$0xf]
        %v2419 = vld [vmem:[#allocation8 + $0x1c] sm:$0xf]
        %v2420 = vld [vmem:[#allocation8 + $0x20] sm:$0xf]
        %v2421 = vld [vmem:[#allocation8 + $0x24] sm:$0xf]
        %v2422 = vld [vmem:[#allocation8 + $0x28] sm:$0xf]
        %v2423 = vld [vmem:[#allocation8 + $0x2c] sm:$0xf]
        %v2424 = vld [vmem:[#allocation8 + $0x30] sm:$0xf]
        %v2425 = vld [vmem:[#allocation8 + $0x34] sm:$0xf]
        %v2426 = vld [vmem:[#allocation8 + $0x38] sm:$0xf]
        %v2427 = vld [vmem:[#allocation8 + $0x3c] sm:$0xf]
        %v2428 = vld [vmem:[#allocation8 + $0x40] sm:$0xf]
        %v2429 = vld [vmem:[#allocation8 + $0x44] sm:$0xf]
        %v2430 = vld [vmem:[#allocation8 + $0x48] sm:$0xf]
        %v2431 = vld [vmem:[#allocation8 + $0x4c] sm:$0xf]
        %v2432 = vld [vmem:[#allocation8 + $0x50] sm:$0xf]
        %v2433 = vld [vmem:[#allocation8 + $0x54] sm:$0xf]
        %v2434 = vld [vmem:[#allocation8 + $0x58] sm:$0xf]
        %v2435 = vld [vmem:[#allocation8 + $0x5c] sm:$0xf]
        %v2436 = vld [vmem:[#allocation8 + $0x60] sm:$0xf]
        %v2437 = vld [vmem:[#allocation8 + $0x64] sm:$0xf]
        %v2438 = vld [vmem:[#allocation8 + $0x68] sm:$0xf]
        %v2439 = vld [vmem:[#allocation8 + $0x6c] sm:$0xf]
        %v2440 = vld [vmem:[#allocation8 + $0x70] sm:$0xf]
        %v2441 = vld [vmem:[#allocation8 + $0x74] sm:$0xf]
        %v2442 = vld [vmem:[#allocation8 + $0x78] sm:$0xf]
        %v2443 = vld [vmem:[#allocation8 + $0x7c] sm:$0xf]
        %v2444 = vld [vmem:[%s6] sm:$0x1]
        %v2446 = vlaneseq
        %v2447 = vshrl.u32 %v2446, 7
        %v2448 = vsub.s32 0, %v2447
        %v2449 = vrot.slane %v2444, %v2448
        %v2483 = vunpack.c.l.b16 %v2412
        %v2484 = vunpack.c.l.b16 %v2413
        %v2485 = vunpack.c.l.b16 %v2414
        %v2486 = vunpack.c.l.b16 %v2415
        %v2487 = vunpack.c.l.b16 %v2416
        %v2488 = vunpack.c.l.b16 %v2417
        %v2489 = vunpack.c.l.b16 %v2418
        %v2490 = vunpack.c.l.b16 %v2419
        %v2491 = vunpack.c.l.b16 %v2420
        %v2492 = vunpack.c.l.b16 %v2421
        %v2493 = vunpack.c.l.b16 %v2422
        %v2494 = vunpack.c.l.b16 %v2423
        %v2495 = vunpack.c.l.b16 %v2424
        %v2496 = vunpack.c.l.b16 %v2425
        %v2497 = vunpack.c.l.b16 %v2426
        %v2498 = vunpack.c.l.b16 %v2427
        %v2499 = vunpack.c.l.b16 %v2428
        %v2500 = vunpack.c.l.b16 %v2429
        %v2501 = vunpack.c.l.b16 %v2430
        %v2502 = vunpack.c.l.b16 %v2431
        %v2503 = vunpack.c.l.b16 %v2432
        %v2504 = vunpack.c.l.b16 %v2433
        %v2505 = vunpack.c.l.b16 %v2434
        %v2506 = vunpack.c.l.b16 %v2435
        %v2507 = vunpack.c.l.b16 %v2436
        %v2508 = vunpack.c.l.b16 %v2437
        %v2509 = vunpack.c.l.b16 %v2438
        %v2510 = vunpack.c.l.b16 %v2439
        %v2511 = vunpack.c.l.b16 %v2440
        %v2512 = vunpack.c.l.b16 %v2441
        %v2513 = vunpack.c.l.b16 %v2442
        %v2514 = vunpack.c.l.b16 %v2443
        %v2515 = vpack.c.b16 %v2484, %v2483
        %v2516 = vpack.c.b16 %v2486, %v2485
        %v2517 = vpack.c.b16 %v2488, %v2487
        %v2518 = vpack.c.b16 %v2490, %v2489
        %v2519 = vpack.c.b16 %v2492, %v2491
        %v2520 = vpack.c.b16 %v2494, %v2493
        %v2521 = vpack.c.b16 %v2496, %v2495
        %v2522 = vpack.c.b16 %v2498, %v2497
        %v2523 = vpack.c.b16 %v2500, %v2499
        %v2524 = vpack.c.b16 %v2502, %v2501
        %v2525 = vpack.c.b16 %v2504, %v2503
        %v2526 = vpack.c.b16 %v2506, %v2505
        %v2527 = vpack.c.b16 %v2508, %v2507
        %v2528 = vpack.c.b16 %v2510, %v2509
        %v2529 = vpack.c.b16 %v2512, %v2511
        %v2530 = vpack.c.b16 %v2514, %v2513
        %2547 = vmatprep.subr.bf16.mxu0 0
        %2548 = vmatpush1.bf16.msra.mxu0 %v2515
        %2549 = vmatprep.subr.bf16.mxu0 0
        %2550 = vmatpush1.bf16.msra.mxu0 %v2516
        %2551 = vmatprep.subr.bf16.mxu0 0
        %2552 = vmatpush1.bf16.msra.mxu0 %v2517
        %2553 = vmatprep.subr.bf16.mxu0 0
        %2554 = vmatpush1.bf16.msra.mxu0 %v2518
        %2555 = vmatprep.subr.bf16.mxu0 0
        %2556 = vmatpush1.bf16.msra.mxu0 %v2519
        %2557 = vmatprep.subr.bf16.mxu0 0
        %2558 = vmatpush1.bf16.msra.mxu0 %v2520
        %2559 = vmatprep.subr.bf16.mxu0 0
        %2560 = vmatpush1.bf16.msra.mxu0 %v2521
        %2561 = vmatprep.subr.bf16.mxu0 0
        %2562 = vmatpush1.bf16.msra.mxu0 %v2522
        %2563 = vmatprep.subr.bf16.mxu0 0
        %2564 = vmatpush1.bf16.msra.mxu0 %v2523
        %2565 = vmatprep.subr.bf16.mxu0 0
        %2566 = vmatpush1.bf16.msra.mxu0 %v2524
        %2567 = vmatprep.subr.bf16.mxu0 0
        %2568 = vmatpush1.bf16.msra.mxu0 %v2525
        %2569 = vmatprep.subr.bf16.mxu0 0
        %2570 = vmatpush1.bf16.msra.mxu0 %v2526
        %2571 = vmatprep.subr.bf16.mxu0 0
        %2572 = vmatpush1.bf16.msra.mxu0 %v2527
        %2573 = vmatprep.subr.bf16.mxu0 0
        %2574 = vmatpush1.bf16.msra.mxu0 %v2528
        %2575 = vmatprep.subr.bf16.mxu0 0
        %2576 = vmatpush1.bf16.msra.mxu0 %v2529
        %2577 = vmatprep.subr.bf16.mxu0 0
        %2578 = vmatpush1.bf16.msra.mxu0 %v2530
        %2579 = vmatprep.mubr.bf16.mxu0 %v2411
        %2580 = vmatmul.mubr.bf16.gmra.mrb[0].mxu0 %v2410
        %v2581 = vpop.f32.mrb[0].mxu0
        %v2582 = vadd.f32 %v2449, %v2581
        %v2583 = vpop.f32.mrb[0].mxu0
        %v2584 = vpop.f32.mrb[0].mxu0
        %v2585 = vadd.f32 %v2449, %v2584
        %v2586 = vpop.f32.mrb[0].mxu0
        %2587 = vdwg.mxu0
        %2588 = vst [vmem:[%s341] sm:$0xff] %v2582
        %2589 = vst [vmem:[%s341 + $0x8] sm:$0xff] %v2585
        %s2590 = sand.u32 %s186, 1
        %s2591 = scalar_lea.sflag [#allocation4], %s2590
        %s2592 = sand.u32 %s186, 1
        %s2593 = smul.addr %s2592, 16
        %s2594 = scalar_lea.vmem [#allocation10], %s2593
        // Predicated region
        $region65: #{tpu_custom_call.1} parent=47 // pred_check
          %p2595 = pneg %p196
        $region66: #{tpu_custom_call.1} parent=47 // pred_check_branch
          %2597 = sbr.rel (%p2595) target = $region68
        $region67: #{tpu_custom_call.1} parent=47 // pred_region
          %s2598 = smul.u32 2, %s26
          %s2600 = ssub.s32 256, 256
          %2601 = vsyncadd %s2591, %s2600
          %s2602 = smul.addr %s2598, 128
          %s2603 = scalar_lea.hbm %s7, %s2602
          %s2604 = sshll.u32 %s2594, 4
          %s2605 = int_to_ptr.vmem [resolvable:$true] %s2604
          %2610 = dma.vmem_to_hbm [thread:$0]  %s2605, 256, %s2603, %s2591, 128, 128, 8
        $region68: #{tpu_custom_call.1} parent=47 // pred_fallthru
          _
      $region48: #{tpu_custom_call.1} parent=5 // pred_fallthru
        _
      %p2611 = scmp.le.s32.totalorder 2, %s21
      // Predicated region
      $region69: #{tpu_custom_call.1} parent=5 // pred_check
        %p2612 = pneg %p2611
      $region70: #{tpu_custom_call.1} parent=5 // pred_check_branch
        %2614 = sbr.rel (%p2612) target = $region72
      $region71: #{tpu_custom_call.1} parent=5 // pred_region
        %s2615 = ssub.s32 %s21, 2
        // Predicated region
        $region73: #{tpu_custom_call.1} parent=71 // pred_check
          %p2616 = pneg %p202
        $region74: #{tpu_custom_call.1} parent=71 // pred_check_branch
          %2618 = sbr.rel (%p2616) target = $region76
        $region75: #{tpu_custom_call.1} parent=71 // pred_region
          %s2619 = sand.u32 %s187, 1
          %s2620 = scalar_lea.sflag [#allocation4], %s2619
          %s2621 = sand.u32 %s187, 1
          %s2622 = smul.addr %s2621, 16
          %s2623 = scalar_lea.vmem [#allocation10], %s2622
          %2624 = dma.done %s2620, 256
        $region76: #{tpu_custom_call.1} parent=71 // pred_fallthru
          _
      $region72: #{tpu_custom_call.1} parent=5 // pred_fallthru
        _
    $region6: #{tpu_custom_call.1} parent=1 // loop_footer
      %s25 = sadd.s32 1, %s21
    $region7: #{tpu_custom_call.1} parent=1 // loop_footer_branch
      %20 = sbr.rel target = $region3
    $region8: #{tpu_custom_call.1} parent=1 // loop_exit
      _
    %2625 = vsyncpa [#allocation3], 1
    %s2626 = scalar_lea.sflag [#allocation3], 1
    %2627 = vsyncpa %s2626, 1
    %2628 = vsyncpa [#allocation6], 1
    %2629 = vsyncpa [#allocation9], 1
    %2630 = vsyncpa [#allocation4], 1
    %s2631 = scalar_lea.sflag [#allocation4], 1
    %2632 = vsyncpa %s2631, 1

</llo_original>
